<compile_context>
chip_gen: v6e
topology: v6e:2x2x1
jax: 0.10.0
libtpu: 0.0.40
codegen_flags: <defaults>
</compile_context>

<pallas_src>
import functools

import jax
import jax.numpy as jnp
from jax.experimental import pallas as pl
from jax.experimental.pallas import tpu as pltpu


def _round_up(n, m):
    return ((n + m - 1) // m) * m


def _encoder_kernel(
    x_ref,        # (Tc*B, Dp)   bf16  this chunk's inputs (batch padded to 8)
    w_i_ref,      # (Dp, 3*Hp)   bf16  fused [W_ir | W_iz | W_in]
    w_h_ref,      # (Hp, 3*Hp)   bf16  fused [W_hr | W_hz | W_hn]
    b_x_ref,      # (1, 3*Hp)    f32   [b_ir+b_hr | b_iz+b_hz | b_in]
    b_hn_ref,     # (1, Hp)      f32   b_hn (kept separate: multiplied by r)
    w_lin_ref,    # (Hp, Op)     bf16  final Linear weight (pre-transposed)
    b_lin_ref,    # (1, Op)      f32
    out_ref,      # (Tc*B, Op)   f32
    xi_ref,       # scratch VMEM (Tc*B, 3*Hp) f32: hoisted input contributions
    h_seq_ref,    # scratch VMEM (Tc*B, Hp)   f32: hidden-state history (chunk)
    h_carry_ref,  # scratch VMEM (B, Hp)      f32: hidden state across chunks
    *, Tc, B, Hp,
):
    # PyTorch GRU uses a zero initial hidden state when h0 is not given.
    @pl.when(pl.program_id(0) == 0)
    def _():
        h_carry_ref[...] = jnp.zeros_like(h_carry_ref)

    # --- Hoisted input-to-hidden contribution for the whole chunk (1 matmul). ---
    xi_ref[...] = (
        jnp.dot(x_ref[...], w_i_ref[...], preferred_element_type=jnp.float32)
        + b_x_ref[...]
    )

    w_h = w_h_ref[...]
    # Hoist the (1,Hp)->(B,Hp) broadcast out of the serial loop (no in-loop CSE).
    b_hn = jnp.broadcast_to(b_hn_ref[...], (B, Hp))

    # --- Sequential recurrence over the chunk (1 MXU matmul per step). ---
    def step(t, h):
        off = pl.multiple_of(t * B, B)               # B is a multiple of 8 rows
        xi = xi_ref[pl.ds(off, B), :]                # (B, 3Hp), lane-aligned
        hh = jnp.dot(h.astype(jnp.bfloat16), w_h,
                     preferred_element_type=jnp.float32)  # (B, 3Hp)

        r = jax.nn.sigmoid(xi[:, :Hp] + hh[:, :Hp])
        z = jax.nn.sigmoid(xi[:, Hp:2 * Hp] + hh[:, Hp:2 * Hp])
        n = jnp.tanh(xi[:, 2 * Hp:] + r * (hh[:, 2 * Hp:] + b_hn))
        h_new = (1.0 - z) * n + z * h

        h_seq_ref[pl.ds(off, B), :] = h_new          # full-lane, unmasked store
        return h_new

    # Fully unrolled: each step is tiny and latency-bound; unrolling gives the
    # scheduler visibility to overlap adjacent steps.
    h_last = jax.lax.fori_loop(0, Tc, step, h_carry_ref[...], unroll=True)
    h_carry_ref[...] = h_last

    # --- Hoisted output projection for the whole chunk (1 matmul, 1 store). ---
    out_ref[...] = (
        jnp.dot(h_seq_ref[...].astype(jnp.bfloat16), w_lin_ref[...],
                preferred_element_type=jnp.float32)
        + b_lin_ref[...]
    ).astype(out_ref.dtype)


def encoder_forward(x, params, *, time_chunk=4):
    """x: (T, B, D) float32.  Returns (T, B, O) float32."""
    T, B, D = x.shape
    H = params["w_hr"].shape[0]
    O = params["w_lin"].shape[1]

    # Layout padding: batch to 8 sublanes, features to lane multiples.
    B_pad = _round_up(B, 8)
    D_pad = _round_up(D, 8)
    H_pad = _round_up(H, 128)
    O_pad = _round_up(O, 128)
    Tc = min(time_chunk, T)
    T_pad = _round_up(T, Tc)
    n_chunks = T_pad // Tc
    rows = Tc * B_pad

    # Zero-pad x; padded batch rows / trailing timesteps are stripped below.
    xp = jnp.zeros((T_pad, B_pad, D_pad), jnp.float32).at[:T, :B, :D].set(x)
    x2 = xp.reshape(T_pad * B_pad, D_pad).astype(jnp.bfloat16)

    pad = lambda a, r, c: jnp.pad(a, ((0, r - a.shape[0]), (0, c - a.shape[1])))

    # Fused, zero-padded, bf16 weights (zero padding keeps padded hidden units
    # exactly at 0 through the GRU recurrence, so results are unchanged).
    w_i = jnp.concatenate(
        [pad(params["w_ir"], D_pad, H_pad),
         pad(params["w_iz"], D_pad, H_pad),
         pad(params["w_in"], D_pad, H_pad)], axis=1).astype(jnp.bfloat16)
    w_h = jnp.concatenate(
        [pad(params["w_hr"], H_pad, H_pad),
         pad(params["w_hz"], H_pad, H_pad),
         pad(params["w_hn"], H_pad, H_pad)], axis=1).astype(jnp.bfloat16)
    b_x = jnp.concatenate(
        [pad(params["b_ir"] + params["b_hr"], 1, H_pad),
         pad(params["b_iz"] + params["b_hz"], 1, H_pad),
         pad(params["b_in"], 1, H_pad)], axis=1)
    b_hn = pad(params["b_hn"], 1, H_pad)
    w_lin = pad(params["w_lin"], H_pad, O_pad).astype(jnp.bfloat16)
    b_lin = pad(params["b_lin"], 1, O_pad)

    kernel = functools.partial(_encoder_kernel, Tc=Tc, B=B_pad, Hp=H_pad)

    flops = 2 * T_pad * B_pad * (
        D_pad * 3 * H_pad + H_pad * 3 * H_pad + H_pad * O_pad)
    cost = pl.CostEstimate(
        flops=flops,
        transcendentals=3 * T_pad * B_pad * H_pad,
        bytes_accessed=(x2.size * 2 + T_pad * B_pad * O_pad * 4
                        + w_i.size * 2 + w_h.size * 2 + w_lin.size * 2
                        + (b_x.size + b_hn.size + b_lin.size) * 4),
    )

    out2 = pl.pallas_call(
        kernel,
        out_shape=jax.ShapeDtypeStruct((T_pad * B_pad, O_pad), jnp.float32),
        grid_spec=pltpu.PrefetchScalarGridSpec(
            num_scalar_prefetch=0,
            grid=(n_chunks,),
            in_specs=[
                pl.BlockSpec((rows, D_pad), lambda t: (t, 0)),      # x chunk
                pl.BlockSpec((D_pad, 3 * H_pad), lambda t: (0, 0)),  # W_i
                pl.BlockSpec((H_pad, 3 * H_pad), lambda t: (0, 0)),  # W_h
                pl.BlockSpec((1, 3 * H_pad), lambda t: (0, 0)),      # b_x
                pl.BlockSpec((1, H_pad), lambda t: (0, 0)),          # b_hn
                pl.BlockSpec((H_pad, O_pad), lambda t: (0, 0)),      # W_lin
                pl.BlockSpec((1, O_pad), lambda t: (0, 0)),          # b_lin
            ],
            out_specs=pl.BlockSpec((rows, O_pad), lambda t: (t, 0)),
            scratch_shapes=[
                pltpu.VMEM((rows, 3 * H_pad), jnp.float32),  # xi (x @ W_i + b)
                pltpu.VMEM((rows, H_pad), jnp.float32),      # hidden history
                pltpu.VMEM((B_pad, H_pad), jnp.float32),     # h carry (persists)
            ]),
        compiler_params=pltpu.CompilerParams(
            dimension_semantics=("arbitrary",)),   # T is sequential (h carry)
        cost_estimate=cost,
    )(x2, w_i, w_h, b_x, b_hn, w_lin, b_lin)

    return out2.reshape(T_pad, B_pad, O_pad)[:T, :B, :O]


def encoder_reference(x, params):
    """Pure-JAX float32 reference (lax.scan) for correctness check."""
    def step(h, x_t):
        i_r = x_t @ params["w_ir"] + params["b_ir"]
        i_z = x_t @ params["w_iz"] + params["b_iz"]
        i_n = x_t @ params["w_in"] + params["b_in"]
        h_r = h @ params["w_hr"] + params["b_hr"]
        h_z = h @ params["w_hz"] + params["b_hz"]
        h_n = h @ params["w_hn"] + params["b_hn"]
        r = jax.nn.sigmoid(i_r + h_r)
        z = jax.nn.sigmoid(i_z + h_z)
        n = jnp.tanh(i_n + r * h_n)
        h_new = (1.0 - z) * n + z * h
        y = h_new @ params["w_lin"] + params["b_lin"]
        return h_new, y

    T, B, _ = x.shape
    H = params["w_hr"].shape[0]
    h0 = jnp.zeros((B, H), jnp.float32)
    _, ys = jax.lax.scan(step, h0, x)
    return ys


def init_params(key, input_size, hidden_size, output_size):
    """Deterministic init mirroring nn.GRU / nn.Linear shapes (uniform +-1/sqrt(H))."""
    ks = jax.random.split(key, 14)
    kgru = 1.0 / jnp.sqrt(hidden_size)
    klin = 1.0 / jnp.sqrt(hidden_size)
    u = lambda k, shape, bound: jax.random.uniform(
        k, shape, jnp.float32, -bound, bound)
    D, H, O = input_size, hidden_size, output_size
    return {
        # input->hidden gate weights, stored pre-transposed as (D, H)
        "w_ir": u(ks[0], (D, H), kgru), "w_iz": u(ks[1], (D, H), kgru),
        "w_in": u(ks[2], (D, H), kgru),
        # hidden->hidden gate weights, stored pre-transposed as (H, H)
        "w_hr": u(ks[3], (H, H), kgru), "w_hz": u(ks[4], (H, H), kgru),
        "w_hn": u(ks[5], (H, H), kgru),
        # biases, kept 2-D (1, H) for TPU-friendly layout
        "b_ir": u(ks[6], (1, H), kgru), "b_iz": u(ks[7], (1, H), kgru),
        "b_in": u(ks[8], (1, H), kgru),
        "b_hr": u(ks[9], (1, H), kgru), "b_hz": u(ks[10], (1, H), kgru),
        "b_hn": u(ks[11], (1, H), kgru),
        # final Linear(hidden, output), stored pre-transposed as (H, O)
        "w_lin": u(ks[12], (H, O), klin),
        "b_lin": u(ks[13], (1, O), klin),
    }


if __name__ == "__main__":
    # Lorenz latent-SDE encoder: 3-d observations -> hidden -> context vector.
    T, B = 8, 4
    input_size, hidden_size, output_size = 3, 32, 16

    key = jax.random.PRNGKey(0)
    kx, kp = jax.random.split(key)
    x = jax.random.normal(kx, (T, B, input_size), jnp.float32)
    params = init_params(kp, input_size, hidden_size, output_size)

    out = jax.block_until_ready(encoder_forward(x, params, time_chunk=4))
    ref = jax.block_until_ready(encoder_reference(x, params))

    assert out.shape == (T, B, output_size), out.shape
    # bf16 MXU operands with f32 accumulation: compare with loosened tolerance.
    max_err = float(jnp.max(jnp.abs(out - ref)))
    assert jnp.allclose(out, ref, atol=2e-2, rtol=1e-2), max_err

    print("KERNEL_OK")
</pallas_src>

<mosaic_0001>
module attributes {stable_mosaic.version = 11 : i64} {
  func.func @_encoder_kernel(%arg0: i32, %arg1: memref<32x8xbf16, #tpu.memory_space<vmem>>, %arg2: memref<8x384xbf16, #tpu.memory_space<vmem>>, %arg3: memref<128x384xbf16, #tpu.memory_space<vmem>>, %arg4: memref<1x384xf32, #tpu.memory_space<vmem>>, %arg5: memref<1x128xf32, #tpu.memory_space<vmem>>, %arg6: memref<128x128xbf16, #tpu.memory_space<vmem>>, %arg7: memref<1x128xf32, #tpu.memory_space<vmem>>, %arg8: memref<32x128xf32, #tpu.memory_space<vmem>>, %arg9: memref<32x384xf32, #tpu.memory_space<vmem>>, %arg10: memref<32x128xf32, #tpu.memory_space<vmem>>, %arg11: memref<8x128xf32, #tpu.memory_space<vmem>>) attributes {dimension_semantics = [#tpu.dimension_semantics<arbitrary>], iteration_bounds = array<i64: 2>, scalar_prefetch = 0 : i64, scratch_operands = 3 : i64, tpu.core_type = #tpu.core_type<tc>, window_params = [{transform_indices = @transform_0, window_bounds = array<i64: 32, 8>}, {pipeline_mode = #tpu.pipeline_mode<synchronous>, transform_indices = @transform_1, window_bounds = array<i64: 8, 384>}, {pipeline_mode = #tpu.pipeline_mode<synchronous>, transform_indices = @transform_2, window_bounds = array<i64: 128, 384>}, {pipeline_mode = #tpu.pipeline_mode<synchronous>, transform_indices = @transform_3, window_bounds = array<i64: 1, 384>}, {pipeline_mode = #tpu.pipeline_mode<synchronous>, transform_indices = @transform_4, window_bounds = array<i64: 1, 128>}, {pipeline_mode = #tpu.pipeline_mode<synchronous>, transform_indices = @transform_5, window_bounds = array<i64: 128, 128>}, {pipeline_mode = #tpu.pipeline_mode<synchronous>, transform_indices = @transform_6, window_bounds = array<i64: 1, 128>}, {transform_indices = @transform_7, window_bounds = array<i64: 32, 128>}]} {
    %c0_i32 = arith.constant 0 : i32
    %0 = arith.cmpi eq, %arg0, %c0_i32 : i32
    %1 = arith.extui %0 : i1 to i32
    %c0_i32_0 = arith.constant 0 : i32
    %2 = arith.cmpi ne, %1, %c0_i32_0 : i32
    scf.if %2 {
      %cst_53 = arith.constant 0.000000e+00 : f32
      %164 = vector.broadcast %cst_53 : f32 to vector<8x128xf32>
      %c0_54 = arith.constant 0 : index
      %c0_55 = arith.constant 0 : index
      %165 = vector.load %arg11[%c0_54, %c0_55] : memref<8x128xf32, #tpu.memory_space<vmem>>, vector<8x128xf32>
      tpu.vector_store %arg11[%c0_54, %c0_55], %164 {strides = array<i32>} : memref<8x128xf32, #tpu.memory_space<vmem>>, vector<8x128xf32>,
    } else {
    }
    %c0 = arith.constant 0 : index
    %c0_1 = arith.constant 0 : index
    %3 = vector.load %arg1[%c0, %c0_1] : memref<32x8xbf16, #tpu.memory_space<vmem>>, vector<32x8xbf16>
    %c0_2 = arith.constant 0 : index
    %c0_3 = arith.constant 0 : index
    %4 = vector.load %arg2[%c0_2, %c0_3] : memref<8x384xbf16, #tpu.memory_space<vmem>>, vector<8x384xbf16>
    %cst = arith.constant dense<0.000000e+00> : vector<32x384xf32>
    %5 = tpu.matmul %3, %4, %cst {dimension_numbers = #tpu.dot_dimension_numbers<[1], [0], [0], [1], [0, 0, 1, 1], [], []>} : vector<32x8xbf16>, vector<8x384xbf16>, vector<32x384xf32> -> vector<32x384xf32>
    %c0_4 = arith.constant 0 : index
    %c0_5 = arith.constant 0 : index
    %6 = vector.load %arg4[%c0_4, %c0_5] : memref<1x384xf32, #tpu.memory_space<vmem>>, vector<1x384xf32>
    %7 = vector.broadcast %6 : vector<1x384xf32> to vector<32x384xf32>
    %8 = arith.addf %5, %7 : vector<32x384xf32>
    %c0_6 = arith.constant 0 : index
    %c0_7 = arith.constant 0 : index
    %9 = vector.load %arg9[%c0_6, %c0_7] : memref<32x384xf32, #tpu.memory_space<vmem>>, vector<32x384xf32>
    tpu.vector_store %arg9[%c0_6, %c0_7], %8 {strides = array<i32>} : memref<32x384xf32, #tpu.memory_space<vmem>>, vector<32x384xf32>,
    %c0_8 = arith.constant 0 : index
    %c0_9 = arith.constant 0 : index
    %10 = vector.load %arg3[%c0_8, %c0_9] : memref<128x384xbf16, #tpu.memory_space<vmem>>, vector<128x384xbf16>
    %c0_10 = arith.constant 0 : index
    %c0_11 = arith.constant 0 : index
    %11 = vector.load %arg5[%c0_10, %c0_11] : memref<1x128xf32, #tpu.memory_space<vmem>>, vector<1x128xf32>
    %12 = vector.shape_cast %11 : vector<1x128xf32> to vector<1x128xf32>
    %13 = vector.broadcast %12 : vector<1x128xf32> to vector<8x128xf32>
    %c0_12 = arith.constant 0 : index
    %c0_13 = arith.constant 0 : index
    %14 = vector.load %arg11[%c0_12, %c0_13] : memref<8x128xf32, #tpu.memory_space<vmem>>, vector<8x128xf32>
    %c0_i32_14 = arith.constant 0 : i32
    %c8_i32 = arith.constant 8 : i32
    %15 = arith.muli %c0_i32_14, %c8_i32 : i32
    %16 = tpu.assume_multiple %15, 8 : i32
    %17 = arith.index_cast %16 : i32 to index
    %c0_15 = arith.constant 0 : index
    %18 = vector.load %arg9[%17, %c0_15] : memref<32x384xf32, #tpu.memory_space<vmem>>, vector<8x384xf32>
    %19 = arith.truncf %14 : vector<8x128xf32> to vector<8x128xbf16>
    %cst_16 = arith.constant dense<0.000000e+00> : vector<8x384xf32>
    %20 = tpu.matmul %19, %10, %cst_16 {dimension_numbers = #tpu.dot_dimension_numbers<[1], [0], [0], [1], [0, 0, 1, 1], [], []>} : vector<8x128xbf16>, vector<128x384xbf16>, vector<8x384xf32> -> vector<8x384xf32>
    %21 = vector.extract_strided_slice %18 {offsets = [0, 0], sizes = [8, 128], strides = [1, 1]} : vector<8x384xf32> to vector<8x128xf32>
    %22 = vector.extract_strided_slice %20 {offsets = [0, 0], sizes = [8, 128], strides = [1, 1]} : vector<8x384xf32> to vector<8x128xf32>
    %23 = arith.addf %21, %22 : vector<8x128xf32>
    %24 = arith.negf %23 : vector<8x128xf32>
    %25 = math.exp %24 : vector<8x128xf32>
    %cst_17 = arith.constant 1.000000e+00 : f32
    %26 = vector.broadcast %cst_17 : f32 to vector<8x128xf32>
    %27 = arith.addf %26, %25 : vector<8x128xf32>
    %28 = arith.divf %26, %27 : vector<8x128xf32>
    %29 = vector.extract_strided_slice %18 {offsets = [0, 128], sizes = [8, 128], strides = [1, 1]} : vector<8x384xf32> to vector<8x128xf32>
    %30 = vector.extract_strided_slice %20 {offsets = [0, 128], sizes = [8, 128], strides = [1, 1]} : vector<8x384xf32> to vector<8x128xf32>
    %31 = arith.addf %29, %30 : vector<8x128xf32>
    %32 = arith.negf %31 : vector<8x128xf32>
    %33 = math.exp %32 : vector<8x128xf32>
    %cst_18 = arith.constant 1.000000e+00 : f32
    %34 = vector.broadcast %cst_18 : f32 to vector<8x128xf32>
    %35 = arith.addf %34, %33 : vector<8x128xf32>
    %36 = arith.divf %34, %35 : vector<8x128xf32>
    %37 = vector.extract_strided_slice %18 {offsets = [0, 256], sizes = [8, 128], strides = [1, 1]} : vector<8x384xf32> to vector<8x128xf32>
    %38 = vector.extract_strided_slice %20 {offsets = [0, 256], sizes = [8, 128], strides = [1, 1]} : vector<8x384xf32> to vector<8x128xf32>
    %39 = arith.addf %38, %13 : vector<8x128xf32>
    %40 = arith.mulf %28, %39 : vector<8x128xf32>
    %41 = arith.addf %37, %40 : vector<8x128xf32>
    %42 = math.tanh %41 : vector<8x128xf32>
    %cst_19 = arith.constant 1.000000e+00 : f32
    %43 = vector.broadcast %cst_19 : f32 to vector<8x128xf32>
    %44 = arith.subf %43, %36 : vector<8x128xf32>
    %45 = arith.mulf %44, %42 : vector<8x128xf32>
    %46 = arith.mulf %36, %14 : vector<8x128xf32>
    %47 = arith.addf %45, %46 : vector<8x128xf32>
    %48 = arith.index_cast %16 : i32 to index
    %c0_20 = arith.constant 0 : index
    %49 = vector.load %arg10[%48, %c0_20] : memref<32x128xf32, #tpu.memory_space<vmem>>, vector<8x128xf32>
    tpu.vector_store %arg10[%48, %c0_20], %47 {strides = array<i32>} : memref<32x128xf32, #tpu.memory_space<vmem>>, vector<8x128xf32>,
    %c1_i32 = arith.constant 1 : i32
    %c8_i32_21 = arith.constant 8 : i32
    %50 = arith.muli %c1_i32, %c8_i32_21 : i32
    %51 = tpu.assume_multiple %50, 8 : i32
    %52 = arith.index_cast %51 : i32 to index
    %c0_22 = arith.constant 0 : index
    %53 = vector.load %arg9[%52, %c0_22] : memref<32x384xf32, #tpu.memory_space<vmem>>, vector<8x384xf32>
    %54 = arith.truncf %47 : vector<8x128xf32> to vector<8x128xbf16>
    %cst_23 = arith.constant dense<0.000000e+00> : vector<8x384xf32>
    %55 = tpu.matmul %54, %10, %cst_23 {dimension_numbers = #tpu.dot_dimension_numbers<[1], [0], [0], [1], [0, 0, 1, 1], [], []>} : vector<8x128xbf16>, vector<128x384xbf16>, vector<8x384xf32> -> vector<8x384xf32>
    %56 = vector.extract_strided_slice %53 {offsets = [0, 0], sizes = [8, 128], strides = [1, 1]} : vector<8x384xf32> to vector<8x128xf32>
    %57 = vector.extract_strided_slice %55 {offsets = [0, 0], sizes = [8, 128], strides = [1, 1]} : vector<8x384xf32> to vector<8x128xf32>
    %58 = arith.addf %56, %57 : vector<8x128xf32>
    %59 = arith.negf %58 : vector<8x128xf32>
    %60 = math.exp %59 : vector<8x128xf32>
    %cst_24 = arith.constant 1.000000e+00 : f32
    %61 = vector.broadcast %cst_24 : f32 to vector<8x128xf32>
    %62 = arith.addf %61, %60 : vector<8x128xf32>
    %63 = arith.divf %61, %62 : vector<8x128xf32>
    %64 = vector.extract_strided_slice %53 {offsets = [0, 128], sizes = [8, 128], strides = [1, 1]} : vector<8x384xf32> to vector<8x128xf32>
    %65 = vector.extract_strided_slice %55 {offsets = [0, 128], sizes = [8, 128], strides = [1, 1]} : vector<8x384xf32> to vector<8x128xf32>
    %66 = arith.addf %64, %65 : vector<8x128xf32>
    %67 = arith.negf %66 : vector<8x128xf32>
    %68 = math.exp %67 : vector<8x128xf32>
    %cst_25 = arith.constant 1.000000e+00 : f32
    %69 = vector.broadcast %cst_25 : f32 to vector<8x128xf32>
    %70 = arith.addf %69, %68 : vector<8x128xf32>
    %71 = arith.divf %69, %70 : vector<8x128xf32>
    %72 = vector.extract_strided_slice %53 {offsets = [0, 256], sizes = [8, 128], strides = [1, 1]} : vector<8x384xf32> to vector<8x128xf32>
    %73 = vector.extract_strided_slice %55 {offsets = [0, 256], sizes = [8, 128], strides = [1, 1]} : vector<8x384xf32> to vector<8x128xf32>
    %74 = arith.addf %73, %13 : vector<8x128xf32>
    %75 = arith.mulf %63, %74 : vector<8x128xf32>
    %76 = arith.addf %72, %75 : vector<8x128xf32>
    %77 = math.tanh %76 : vector<8x128xf32>
    %cst_26 = arith.constant 1.000000e+00 : f32
    %78 = vector.broadcast %cst_26 : f32 to vector<8x128xf32>
    %79 = arith.subf %78, %71 : vector<8x128xf32>
    %80 = arith.mulf %79, %77 : vector<8x128xf32>
    %81 = arith.mulf %71, %47 : vector<8x128xf32>
    %82 = arith.addf %80, %81 : vector<8x128xf32>
    %83 = arith.index_cast %51 : i32 to index
    %c0_27 = arith.constant 0 : index
    %84 = vector.load %arg10[%83, %c0_27] : memref<32x128xf32, #tpu.memory_space<vmem>>, vector<8x128xf32>
    tpu.vector_store %arg10[%83, %c0_27], %82 {strides = array<i32>} : memref<32x128xf32, #tpu.memory_space<vmem>>, vector<8x128xf32>,
    %c2_i32 = arith.constant 2 : i32
    %c8_i32_28 = arith.constant 8 : i32
    %85 = arith.muli %c2_i32, %c8_i32_28 : i32
    %86 = tpu.assume_multiple %85, 8 : i32
    %87 = arith.index_cast %86 : i32 to index
    %c0_29 = arith.constant 0 : index
    %88 = vector.load %arg9[%87, %c0_29] : memref<32x384xf32, #tpu.memory_space<vmem>>, vector<8x384xf32>
    %89 = arith.truncf %82 : vector<8x128xf32> to vector<8x128xbf16>
    %cst_30 = arith.constant dense<0.000000e+00> : vector<8x384xf32>
    %90 = tpu.matmul %89, %10, %cst_30 {dimension_numbers = #tpu.dot_dimension_numbers<[1], [0], [0], [1], [0, 0, 1, 1], [], []>} : vector<8x128xbf16>, vector<128x384xbf16>, vector<8x384xf32> -> vector<8x384xf32>
    %91 = vector.extract_strided_slice %88 {offsets = [0, 0], sizes = [8, 128], strides = [1, 1]} : vector<8x384xf32> to vector<8x128xf32>
    %92 = vector.extract_strided_slice %90 {offsets = [0, 0], sizes = [8, 128], strides = [1, 1]} : vector<8x384xf32> to vector<8x128xf32>
    %93 = arith.addf %91, %92 : vector<8x128xf32>
    %94 = arith.negf %93 : vector<8x128xf32>
    %95 = math.exp %94 : vector<8x128xf32>
    %cst_31 = arith.constant 1.000000e+00 : f32
    %96 = vector.broadcast %cst_31 : f32 to vector<8x128xf32>
    %97 = arith.addf %96, %95 : vector<8x128xf32>
    %98 = arith.divf %96, %97 : vector<8x128xf32>
    %99 = vector.extract_strided_slice %88 {offsets = [0, 128], sizes = [8, 128], strides = [1, 1]} : vector<8x384xf32> to vector<8x128xf32>
    %100 = vector.extract_strided_slice %90 {offsets = [0, 128], sizes = [8, 128], strides = [1, 1]} : vector<8x384xf32> to vector<8x128xf32>
    %101 = arith.addf %99, %100 : vector<8x128xf32>
    %102 = arith.negf %101 : vector<8x128xf32>
    %103 = math.exp %102 : vector<8x128xf32>
    %cst_32 = arith.constant 1.000000e+00 : f32
    %104 = vector.broadcast %cst_32 : f32 to vector<8x128xf32>
    %105 = arith.addf %104, %103 : vector<8x128xf32>
    %106 = arith.divf %104, %105 : vector<8x128xf32>
    %107 = vector.extract_strided_slice %88 {offsets = [0, 256], sizes = [8, 128], strides = [1, 1]} : vector<8x384xf32> to vector<8x128xf32>
    %108 = vector.extract_strided_slice %90 {offsets = [0, 256], sizes = [8, 128], strides = [1, 1]} : vector<8x384xf32> to vector<8x128xf32>
    %109 = arith.addf %108, %13 : vector<8x128xf32>
    %110 = arith.mulf %98, %109 : vector<8x128xf32>
    %111 = arith.addf %107, %110 : vector<8x128xf32>
    %112 = math.tanh %111 : vector<8x128xf32>
    %cst_33 = arith.constant 1.000000e+00 : f32
    %113 = vector.broadcast %cst_33 : f32 to vector<8x128xf32>
    %114 = arith.subf %113, %106 : vector<8x128xf32>
    %115 = arith.mulf %114, %112 : vector<8x128xf32>
    %116 = arith.mulf %106, %82 : vector<8x128xf32>
    %117 = arith.addf %115, %116 : vector<8x128xf32>
    %118 = arith.index_cast %86 : i32 to index
    %c0_34 = arith.constant 0 : index
    %119 = vector.load %arg10[%118, %c0_34] : memref<32x128xf32, #tpu.memory_space<vmem>>, vector<8x128xf32>
    tpu.vector_store %arg10[%118, %c0_34], %117 {strides = array<i32>} : memref<32x128xf32, #tpu.memory_space<vmem>>, vector<8x128xf32>,
    %c3_i32 = arith.constant 3 : i32
    %c8_i32_35 = arith.constant 8 : i32
    %120 = arith.muli %c3_i32, %c8_i32_35 : i32
    %121 = tpu.assume_multiple %120, 8 : i32
    %122 = arith.index_cast %121 : i32 to index
    %c0_36 = arith.constant 0 : index
    %123 = vector.load %arg9[%122, %c0_36] : memref<32x384xf32, #tpu.memory_space<vmem>>, vector<8x384xf32>
    %124 = arith.truncf %117 : vector<8x128xf32> to vector<8x128xbf16>
    %cst_37 = arith.constant dense<0.000000e+00> : vector<8x384xf32>
    %125 = tpu.matmul %124, %10, %cst_37 {dimension_numbers = #tpu.dot_dimension_numbers<[1], [0], [0], [1], [0, 0, 1, 1], [], []>} : vector<8x128xbf16>, vector<128x384xbf16>, vector<8x384xf32> -> vector<8x384xf32>
    %126 = vector.extract_strided_slice %123 {offsets = [0, 0], sizes = [8, 128], strides = [1, 1]} : vector<8x384xf32> to vector<8x128xf32>
    %127 = vector.extract_strided_slice %125 {offsets = [0, 0], sizes = [8, 128], strides = [1, 1]} : vector<8x384xf32> to vector<8x128xf32>
    %128 = arith.addf %126, %127 : vector<8x128xf32>
    %129 = arith.negf %128 : vector<8x128xf32>
    %130 = math.exp %129 : vector<8x128xf32>
    %cst_38 = arith.constant 1.000000e+00 : f32
    %131 = vector.broadcast %cst_38 : f32 to vector<8x128xf32>
    %132 = arith.addf %131, %130 : vector<8x128xf32>
    %133 = arith.divf %131, %132 : vector<8x128xf32>
    %134 = vector.extract_strided_slice %123 {offsets = [0, 128], sizes = [8, 128], strides = [1, 1]} : vector<8x384xf32> to vector<8x128xf32>
    %135 = vector.extract_strided_slice %125 {offsets = [0, 128], sizes = [8, 128], strides = [1, 1]} : vector<8x384xf32> to vector<8x128xf32>
    %136 = arith.addf %134, %135 : vector<8x128xf32>
    %137 = arith.negf %136 : vector<8x128xf32>
    %138 = math.exp %137 : vector<8x128xf32>
    %cst_39 = arith.constant 1.000000e+00 : f32
    %139 = vector.broadcast %cst_39 : f32 to vector<8x128xf32>
    %140 = arith.addf %139, %138 : vector<8x128xf32>
    %141 = arith.divf %139, %140 : vector<8x128xf32>
    %142 = vector.extract_strided_slice %123 {offsets = [0, 256], sizes = [8, 128], strides = [1, 1]} : vector<8x384xf32> to vector<8x128xf32>
    %143 = vector.extract_strided_slice %125 {offsets = [0, 256], sizes = [8, 128], strides = [1, 1]} : vector<8x384xf32> to vector<8x128xf32>
    %144 = arith.addf %143, %13 : vector<8x128xf32>
    %145 = arith.mulf %133, %144 : vector<8x128xf32>
    %146 = arith.addf %142, %145 : vector<8x128xf32>
    %147 = math.tanh %146 : vector<8x128xf32>
    %cst_40 = arith.constant 1.000000e+00 : f32
    %148 = vector.broadcast %cst_40 : f32 to vector<8x128xf32>
    %149 = arith.subf %148, %141 : vector<8x128xf32>
    %150 = arith.mulf %149, %147 : vector<8x128xf32>
    %151 = arith.mulf %141, %117 : vector<8x128xf32>
    %152 = arith.addf %150, %151 : vector<8x128xf32>
    %153 = arith.index_cast %121 : i32 to index
    %c0_41 = arith.constant 0 : index
    %154 = vector.load %arg10[%153, %c0_41] : memref<32x128xf32, #tpu.memory_space<vmem>>, vector<8x128xf32>
    tpu.vector_store %arg10[%153, %c0_41], %152 {strides = array<i32>} : memref<32x128xf32, #tpu.memory_space<vmem>>, vector<8x128xf32>,
    %c4_i32 = arith.constant 4 : i32
    %c0_42 = arith.constant 0 : index
    %c0_43 = arith.constant 0 : index
    %155 = vector.load %arg11[%c0_42, %c0_43] : memref<8x128xf32, #tpu.memory_space<vmem>>, vector<8x128xf32>
    tpu.vector_store %arg11[%c0_42, %c0_43], %152 {strides = array<i32>} : memref<8x128xf32, #tpu.memory_space<vmem>>, vector<8x128xf32>,
    %c0_44 = arith.constant 0 : index
    %c0_45 = arith.constant 0 : index
    %156 = vector.load %arg10[%c0_44, %c0_45] : memref<32x128xf32, #tpu.memory_space<vmem>>, vector<32x128xf32>
    %157 = arith.truncf %156 : vector<32x128xf32> to vector<32x128xbf16>
    %c0_46 = arith.constant 0 : index
    %c0_47 = arith.constant 0 : index
    %158 = vector.load %arg6[%c0_46, %c0_47] : memref<128x128xbf16, #tpu.memory_space<vmem>>, vector<128x128xbf16>
    %cst_48 = arith.constant dense<0.000000e+00> : vector<32x128xf32>
    %159 = tpu.matmul %157, %158, %cst_48 {dimension_numbers = #tpu.dot_dimension_numbers<[1], [0], [0], [1], [0, 0, 1, 1], [], []>} : vector<32x128xbf16>, vector<128x128xbf16>, vector<32x128xf32> -> vector<32x128xf32>
    %c0_49 = arith.constant 0 : index
    %c0_50 = arith.constant 0 : index
    %160 = vector.load %arg7[%c0_49, %c0_50] : memref<1x128xf32, #tpu.memory_space<vmem>>, vector<1x128xf32>
    %161 = vector.broadcast %160 : vector<1x128xf32> to vector<32x128xf32>
    %162 = arith.addf %159, %161 : vector<32x128xf32>
    %c0_51 = arith.constant 0 : index
    %c0_52 = arith.constant 0 : index
    %163 = vector.load %arg8[%c0_51, %c0_52] : memref<32x128xf32, #tpu.memory_space<vmem>>, vector<32x128xf32>
    tpu.vector_store %arg8[%c0_51, %c0_52], %162 {strides = array<i32>} : memref<32x128xf32, #tpu.memory_space<vmem>>, vector<32x128xf32>,
    return
  }
  func.func @transform_0(%arg0: i32) -> (i32, i32) {
    %c0_i32 = arith.constant 0 : i32
    %c0_i32_0 = arith.constant 0 : i32
    return %arg0, %c0_i32 : i32, i32
  }
  func.func @transform_1(%arg0: i32) -> (i32, i32) {
    %c0_i32 = arith.constant 0 : i32
    %c0_i32_0 = arith.constant 0 : i32
    %c0_i32_1 = arith.constant 0 : i32
    return %c0_i32, %c0_i32_0 : i32, i32
  }
  func.func @transform_2(%arg0: i32) -> (i32, i32) {
    %c0_i32 = arith.constant 0 : i32
    %c0_i32_0 = arith.constant 0 : i32
    %c0_i32_1 = arith.constant 0 : i32
    return %c0_i32, %c0_i32_0 : i32, i32
  }
  func.func @transform_3(%arg0: i32) -> (i32, i32) {
    %c0_i32 = arith.constant 0 : i32
    %c0_i32_0 = arith.constant 0 : i32
    %c0_i32_1 = arith.constant 0 : i32
    return %c0_i32, %c0_i32_0 : i32, i32
  }
  func.func @transform_4(%arg0: i32) -> (i32, i32) {
    %c0_i32 = arith.constant 0 : i32
    %c0_i32_0 = arith.constant 0 : i32
    %c0_i32_1 = arith.constant 0 : i32
    return %c0_i32, %c0_i32_0 : i32, i32
  }
  func.func @transform_5(%arg0: i32) -> (i32, i32) {
    %c0_i32 = arith.constant 0 : i32
    %c0_i32_0 = arith.constant 0 : i32
    %c0_i32_1 = arith.constant 0 : i32
    return %c0_i32, %c0_i32_0 : i32, i32
  }
  func.func @transform_6(%arg0: i32) -> (i32, i32) {
    %c0_i32 = arith.constant 0 : i32
    %c0_i32_0 = arith.constant 0 : i32
    %c0_i32_1 = arith.constant 0 : i32
    return %c0_i32, %c0_i32_0 : i32, i32
  }
  func.func @transform_7(%arg0: i32) -> (i32, i32) {
    %c0_i32 = arith.constant 0 : i32
    %c0_i32_0 = arith.constant 0 : i32
    return %arg0, %c0_i32 : i32, i32
  }
}

</mosaic_0001>

<llo_original>
// kernel: tpu_custom_call.1
$region0: #{tpu_custom_call.1}
  #allocation0 [shape = 'u32[]', space=smem, size = 0x4, offset = 0x4, fixed_abs, tag = 'smem constant byte address 0x4 - core index']
  #allocation1 [shape = 'u32[144,128]{1,0:T(1,128)}', space=vmem, size = 0x12000, scoped, tag = 'internal scratch']
  #allocation2 [shape = 'f32[32,384]{1,0:T(8,128)}', space=vmem, size = 0xc000, scoped, tag = 'scratch operand']
  #allocation3 [shape = 'f32[32,128]{1,0:T(8,128)}', space=vmem, size = 0x4000, scoped, tag = 'scratch operand']
  #allocation4 [shape = 'f32[8,128]{1,0:T(8,128)}', space=vmem, size = 0x1000, scoped, tag = 'scratch operand']
  %s0 = inlined_call_operand.vmem [shape: bf16[64,8], index: 0, kind: input, shape index: {}]
  %s1 = inlined_call_operand.vmem [shape: bf16[8,384], index: 1, kind: input, shape index: {}]
  %s2 = inlined_call_operand.hbm [shape: bf16[128,384], index: 2, kind: input, shape index: {}]
  %s3 = inlined_call_operand.vmem [shape: f32[1,384], index: 3, kind: input, shape index: {}]
  %s4 = inlined_call_operand.vmem [shape: f32[1,128], index: 4, kind: input, shape index: {}]
  %s5 = inlined_call_operand.hbm [shape: bf16[128,128], index: 5, kind: input, shape index: {}]
  %s6 = inlined_call_operand.vmem [shape: f32[1,128], index: 6, kind: input, shape index: {}]
  %s7 = inlined_call_operand.hbm [shape: f32[64,128], index: 7, kind: output, shape index: {}]
  %s8 = sld [smem:[#allocation0]]
  $region73: #{tpu_custom_call.1} parent=0
    _
  %s10 = ssub.s32 1, %s8
  %s11 = scalar_select 0, %s10, %s8
  $region1: #{tpu_custom_call.1} parent=0
    #allocation5 [shape = 'u8[98304]{0}', space=vmem, size = 0x18000, scoped, tag = 'input window, operand 2, single buffered']
    #allocation6 [shape = 's32[2]{0}', space=sflag, size = 0x8, scoped, tag = 'scoped memory for tpu_custom_call.1']
    #allocation7 [shape = 's32[2]{0}', space=sflag, size = 0x8, scoped, tag = 'scoped memory for tpu_custom_call.1']
    #allocation8 [shape = 'u8[32768]{0}', space=vmem, size = 0x8000, scoped, tag = 'input window, operand 5, single buffered']
    #allocation9 [shape = 's32[1]{0}', space=sflag, size = 0x4, scoped, tag = 'scoped memory for tpu_custom_call.1']
    #allocation10 [shape = 'u8[32768]{0}', space=vmem, size = 0x8000, scoped, tag = 'output window, operand 0']
    %12 = vsyncpa [#allocation6], 0
    %13 = vsyncpa [#allocation9], 0
    %14 = vsyncpa [#allocation7], 0
    %s15 = scalar_lea.sflag [#allocation7], 1
    %16 = vsyncpa %s15, 0
    loop: start=0, step=1, limit=4
    $region2: #{tpu_custom_call.1} parent=1 // loop_pre_header
      _
    $region3: #{tpu_custom_call.1} parent=1 // loop_header
      %s18 = sphi 0, %s22
      %p19 = scmp.ge.s32.totalorder %s18, 4
      %s28 = sphi 0, %s30
      %s31 = sphi 0, %s28
      %s32 = sphi 0, %s31
      %s48 = sphi 0, %s32
      %s52 = sphi 0, %s52
      %s54 = sphi 0, %s52
      %s55 = sphi 0, %s54
      %s69 = sphi 0, %s55
      %s73 = sphi 0, %s73
      %s75 = sphi 0, %s73
      %s76 = sphi 0, %s75
      %s90 = sphi 0, %s76
      %s94 = sphi 0, %s94
      %s96 = sphi 0, %s94
      %s97 = sphi 0, %s96
      %s111 = sphi 0, %s97
      %s115 = sphi 0, %s115
      %s117 = sphi 0, %s115
      %s118 = sphi 0, %s117
      %s132 = sphi 0, %s118
      %s136 = sphi 0, %s136
      %s138 = sphi 0, %s136
      %s139 = sphi 0, %s138
      %s153 = sphi 0, %s139
      %s157 = sphi 0, %s157
      %s159 = sphi 0, %s157
      %s160 = sphi 0, %s159
      %s174 = sphi 0, %s160
      %s180 = sphi 0, %s182
      %s183 = sphi 0, %s180
      %s184 = sphi 0, %s183
      %s200 = sphi 0, %s184
    $region4: #{tpu_custom_call.1} parent=1 // loop_header_branch
      %21 = sbr.rel (%p19) target = $region8
    $region5: #{tpu_custom_call.1} parent=1 // loop_body
      %s23 = ssub.s32 %s18, 1
      %s24 = ssub.s32 %s18, 2
      %s25 = sadd.s32 %s18, 1
      %s26 = ssub.s32 %s18, %s25
      %p27 = scmp.eq.s32.totalorder %s26, 0
      %s29 = sadd.s32 %s28, 1
      %s30 = scalar_select %p27, %s28, %s29
      %p33 = pneg %p27
      %p34 = scmp.eq.s32.totalorder %s18, 1
      %p35 = por %p33, %p34
      %p36 = scmp.ne.s32.totalorder %s28, %s31
      %p37 = scmp.eq.s32.totalorder %s18, 0
      %p38 = por %p36, %p37
      %p39 = scmp.ne.s32.totalorder %s28, %s31
      %p40 = scmp.eq.s32.totalorder %s23, 1
      %p41 = por %p39, %p40
      %p42 = scmp.ne.s32.totalorder %s31, %s32
      %p43 = scmp.eq.s32.totalorder %s23, 0
      %p44 = por %p42, %p43
      %p45 = scmp.ne.s32.totalorder %s31, %s32
      %p46 = scmp.eq.s32.totalorder %s24, 1
      %p47 = por %p45, %p46
      %p49 = scmp.ne.s32.totalorder %s32, %s48
      %p50 = scmp.eq.s32.totalorder %s24, 0
      %p51 = por %p49, %p50
      %s53 = sadd.s32 %s52, 1
      %p56 = scmp.eq.s32.totalorder %s18, 1
      %p57 = scmp.ne.s32.totalorder %s52, %s54
      %p58 = scmp.eq.s32.totalorder %s18, 0
      %p59 = por %p57, %p58
      %p60 = scmp.ne.s32.totalorder %s52, %s54
      %p61 = scmp.eq.s32.totalorder %s23, 1
      %p62 = por %p60, %p61
      %p63 = scmp.ne.s32.totalorder %s54, %s55
      %p64 = scmp.eq.s32.totalorder %s23, 0
      %p65 = por %p63, %p64
      %p66 = scmp.ne.s32.totalorder %s54, %s55
      %p67 = scmp.eq.s32.totalorder %s24, 1
      %p68 = por %p66, %p67
      %p70 = scmp.ne.s32.totalorder %s55, %s69
      %p71 = scmp.eq.s32.totalorder %s24, 0
      %p72 = por %p70, %p71
      %s74 = sadd.s32 %s73, 1
      %p77 = scmp.eq.s32.totalorder %s18, 1
      %p78 = scmp.ne.s32.totalorder %s73, %s75
      %p79 = scmp.eq.s32.totalorder %s18, 0
      %p80 = por %p78, %p79
      %p81 = scmp.ne.s32.totalorder %s73, %s75
      %p82 = scmp.eq.s32.totalorder %s23, 1
      %p83 = por %p81, %p82
      %p84 = scmp.ne.s32.totalorder %s75, %s76
      %p85 = scmp.eq.s32.totalorder %s23, 0
      %p86 = por %p84, %p85
      %p87 = scmp.ne.s32.totalorder %s75, %s76
      %p88 = scmp.eq.s32.totalorder %s24, 1
      %p89 = por %p87, %p88
      %p91 = scmp.ne.s32.totalorder %s76, %s90
      %p92 = scmp.eq.s32.totalorder %s24, 0
      %p93 = por %p91, %p92
      %s95 = sadd.s32 %s94, 1
      %p98 = scmp.eq.s32.totalorder %s18, 1
      %p99 = scmp.ne.s32.totalorder %s94, %s96
      %p100 = scmp.eq.s32.totalorder %s18, 0
      %p101 = por %p99, %p100
      %p102 = scmp.ne.s32.totalorder %s94, %s96
      %p103 = scmp.eq.s32.totalorder %s23, 1
      %p104 = por %p102, %p103
      %p105 = scmp.ne.s32.totalorder %s96, %s97
      %p106 = scmp.eq.s32.totalorder %s23, 0
      %p107 = por %p105, %p106
      %p108 = scmp.ne.s32.totalorder %s96, %s97
      %p109 = scmp.eq.s32.totalorder %s24, 1
      %p110 = por %p108, %p109
      %p112 = scmp.ne.s32.totalorder %s97, %s111
      %p113 = scmp.eq.s32.totalorder %s24, 0
      %p114 = por %p112, %p113
      %s116 = sadd.s32 %s115, 1
      %p119 = scmp.eq.s32.totalorder %s18, 1
      %p120 = scmp.ne.s32.totalorder %s115, %s117
      %p121 = scmp.eq.s32.totalorder %s18, 0
      %p122 = por %p120, %p121
      %p123 = scmp.ne.s32.totalorder %s115, %s117
      %p124 = scmp.eq.s32.totalorder %s23, 1
      %p125 = por %p123, %p124
      %p126 = scmp.ne.s32.totalorder %s117, %s118
      %p127 = scmp.eq.s32.totalorder %s23, 0
      %p128 = por %p126, %p127
      %p129 = scmp.ne.s32.totalorder %s117, %s118
      %p130 = scmp.eq.s32.totalorder %s24, 1
      %p131 = por %p129, %p130
      %p133 = scmp.ne.s32.totalorder %s118, %s132
      %p134 = scmp.eq.s32.totalorder %s24, 0
      %p135 = por %p133, %p134
      %s137 = sadd.s32 %s136, 1
      %p140 = scmp.eq.s32.totalorder %s18, 1
      %p141 = scmp.ne.s32.totalorder %s136, %s138
      %p142 = scmp.eq.s32.totalorder %s18, 0
      %p143 = por %p141, %p142
      %p144 = scmp.ne.s32.totalorder %s136, %s138
      %p145 = scmp.eq.s32.totalorder %s23, 1
      %p146 = por %p144, %p145
      %p147 = scmp.ne.s32.totalorder %s138, %s139
      %p148 = scmp.eq.s32.totalorder %s23, 0
      %p149 = por %p147, %p148
      %p150 = scmp.ne.s32.totalorder %s138, %s139
      %p151 = scmp.eq.s32.totalorder %s24, 1
      %p152 = por %p150, %p151
      %p154 = scmp.ne.s32.totalorder %s139, %s153
      %p155 = scmp.eq.s32.totalorder %s24, 0
      %p156 = por %p154, %p155
      %s158 = sadd.s32 %s157, 1
      %p161 = scmp.eq.s32.totalorder %s18, 1
      %p162 = scmp.ne.s32.totalorder %s157, %s159
      %p163 = scmp.eq.s32.totalorder %s18, 0
      %p164 = por %p162, %p163
      %p165 = scmp.ne.s32.totalorder %s157, %s159
      %p166 = scmp.eq.s32.totalorder %s23, 1
      %p167 = por %p165, %p166
      %p168 = scmp.ne.s32.totalorder %s159, %s160
      %p169 = scmp.eq.s32.totalorder %s23, 0
      %p170 = por %p168, %p169
      %p171 = scmp.ne.s32.totalorder %s159, %s160
      %p172 = scmp.eq.s32.totalorder %s24, 1
      %p173 = por %p171, %p172
      %p175 = scmp.ne.s32.totalorder %s160, %s174
      %p176 = scmp.eq.s32.totalorder %s24, 0
      %p177 = por %p175, %p176
      %s178 = ssub.s32 %s18, %s25
      %p179 = scmp.eq.s32.totalorder %s178, 0
      %s181 = sadd.s32 %s180, 1
      %s182 = scalar_select %p179, %s180, %s181
      %p185 = pneg %p179
      %p186 = scmp.eq.s32.totalorder %s18, 1
      %p187 = por %p185, %p186
      %p188 = scmp.ne.s32.totalorder %s180, %s183
      %p189 = scmp.eq.s32.totalorder %s18, 0
      %p190 = por %p188, %p189
      %p191 = scmp.ne.s32.totalorder %s180, %s183
      %p192 = scmp.eq.s32.totalorder %s23, 1
      %p193 = por %p191, %p192
      %p194 = scmp.ne.s32.totalorder %s183, %s184
      %p195 = scmp.eq.s32.totalorder %s23, 0
      %p196 = por %p194, %p195
      %p197 = scmp.ne.s32.totalorder %s183, %s184
      %p198 = scmp.eq.s32.totalorder %s24, 1
      %p199 = por %p197, %p198
      %p201 = scmp.ne.s32.totalorder %s184, %s200
      %p202 = scmp.eq.s32.totalorder %s24, 0
      %p203 = por %p201, %p202
      %p204 = scmp.le.s32.totalorder 1, %s18
      %p205 = scmp.lt.s32.totalorder %s18, 3
      %p206 = pnand %p204, %p205
      %p207 = pneg %p206
      // Predicated region
      $region9: #{tpu_custom_call.1} parent=5 // pred_check
        _
      $region10: #{tpu_custom_call.1} parent=5 // pred_check_branch
        %209 = sbr.rel (%p206) target = $region12
      $region11: #{tpu_custom_call.1} parent=5 // pred_region
        %s210 = ssub.s32 %s18, 1
        // Predicated region
        $region13: #{tpu_custom_call.1} parent=11 // pred_check
          %p211 = pneg %p65
        $region14: #{tpu_custom_call.1} parent=11 // pred_check_branch
          %213 = sbr.rel (%p211) target = $region16
        $region15: #{tpu_custom_call.1} parent=11 // pred_region
          _
        $region16: #{tpu_custom_call.1} parent=11 // pred_fallthru
          _
        // Predicated region
        $region17: #{tpu_custom_call.1} parent=11 // pred_check
          %p214 = pneg %p86
        $region18: #{tpu_custom_call.1} parent=11 // pred_check_branch
          %216 = sbr.rel (%p214) target = $region20
        $region19: #{tpu_custom_call.1} parent=11 // pred_region
          %s218 = ssub.s32 3072, 3072
          %219 = vsyncadd [#allocation6], %s218
          %s220 = sshll.u32 [#allocation5], 4
          %s221 = int_to_ptr.vmem [resolvable:$true] %s220
          %226 = dma.hbm_to_vmem [thread:$0]  %s2, 3072, %s221, [#allocation6], 192, 192, 12
        $region20: #{tpu_custom_call.1} parent=11 // pred_fallthru
          _
        // Predicated region
        $region21: #{tpu_custom_call.1} parent=11 // pred_check
          %p227 = pneg %p107
        $region22: #{tpu_custom_call.1} parent=11 // pred_check_branch
          %229 = sbr.rel (%p227) target = $region24
        $region23: #{tpu_custom_call.1} parent=11 // pred_region
          _
        $region24: #{tpu_custom_call.1} parent=11 // pred_fallthru
          _
        // Predicated region
        $region25: #{tpu_custom_call.1} parent=11 // pred_check
          %p230 = pneg %p128
        $region26: #{tpu_custom_call.1} parent=11 // pred_check_branch
          %232 = sbr.rel (%p230) target = $region28
        $region27: #{tpu_custom_call.1} parent=11 // pred_region
          _
        $region28: #{tpu_custom_call.1} parent=11 // pred_fallthru
          _
        // Predicated region
        $region29: #{tpu_custom_call.1} parent=11 // pred_check
          %p233 = pneg %p149
        $region30: #{tpu_custom_call.1} parent=11 // pred_check_branch
          %235 = sbr.rel (%p233) target = $region32
        $region31: #{tpu_custom_call.1} parent=11 // pred_region
          %s237 = ssub.s32 1024, 1024
          %238 = vsyncadd [#allocation9], %s237
          %s239 = sshll.u32 [#allocation8], 4
          %s240 = int_to_ptr.vmem [resolvable:$true] %s239
          %245 = dma.hbm_to_vmem [thread:$0]  %s5, 1024, %s240, [#allocation9], 64, 64, 4
        $region32: #{tpu_custom_call.1} parent=11 // pred_fallthru
          _
        // Predicated region
        $region33: #{tpu_custom_call.1} parent=11 // pred_check
          %p246 = pneg %p170
        $region34: #{tpu_custom_call.1} parent=11 // pred_check_branch
          %248 = sbr.rel (%p246) target = $region36
        $region35: #{tpu_custom_call.1} parent=11 // pred_region
          _
        $region36: #{tpu_custom_call.1} parent=11 // pred_fallthru
          _
      $region12: #{tpu_custom_call.1} parent=5 // pred_fallthru
        _
      %p249 = scmp.lt.s32.totalorder %s18, 2
      // Predicated region
      $region37: #{tpu_custom_call.1} parent=5 // pred_check
        %p250 = pneg %p249
      $region38: #{tpu_custom_call.1} parent=5 // pred_check_branch
        %252 = sbr.rel (%p250) target = $region40
      $region39: #{tpu_custom_call.1} parent=5 // pred_region
        // Predicated region
        $region41: #{tpu_custom_call.1} parent=39 // pred_check
          %p253 = pneg %p38
        $region42: #{tpu_custom_call.1} parent=39 // pred_check_branch
          %255 = sbr.rel (%p253) target = $region44
        $region43: #{tpu_custom_call.1} parent=39 // pred_region
          %s256 = smul.u32 4, %s18
          %p257 = scmp.lt.s32.totalorder %s256, 7
          %s258 = scalar_select %p257, %s256, 7
          %s259 = smul.addr %s258, 4
          %s260 = scalar_lea.vmem %s0, %s259
          %s261 = smul.u32 4, %s18
        $region44: #{tpu_custom_call.1} parent=39 // pred_fallthru
          _
      $region40: #{tpu_custom_call.1} parent=5 // pred_fallthru
        _
      %p262 = scmp.le.s32.totalorder 1, %s18
      %p263 = scmp.lt.s32.totalorder %s18, 3
      %p264 = pnand %p262, %p263
      %p265 = pneg %p264
      // Predicated region
      $region45: #{tpu_custom_call.1} parent=5 // pred_check
        _
      $region46: #{tpu_custom_call.1} parent=5 // pred_check_branch
        %267 = sbr.rel (%p264) target = $region48
      $region47: #{tpu_custom_call.1} parent=5 // pred_region
        %s268 = ssub.s32 %s18, 1
        // Predicated region
        $region49: #{tpu_custom_call.1} parent=47 // pred_check
          %p269 = pneg %p86
        $region50: #{tpu_custom_call.1} parent=47 // pred_check_branch
          %271 = sbr.rel (%p269) target = $region52
        $region51: #{tpu_custom_call.1} parent=47 // pred_region
          %272 = dma.done [#allocation6], 3072
        $region52: #{tpu_custom_call.1} parent=47 // pred_fallthru
          _
        // Predicated region
        $region53: #{tpu_custom_call.1} parent=47 // pred_check
          %p273 = pneg %p149
        $region54: #{tpu_custom_call.1} parent=47 // pred_check_branch
          %275 = sbr.rel (%p273) target = $region56
        $region55: #{tpu_custom_call.1} parent=47 // pred_region
          %276 = dma.done [#allocation9], 1024
        $region56: #{tpu_custom_call.1} parent=47 // pred_fallthru
          _
        %s277 = smul.u32 4, %s23
        %p278 = scmp.lt.s32.totalorder %s277, 7
        %s279 = scalar_select %p278, %s277, 7
        %s280 = smul.addr %s279, 4
        %s281 = scalar_lea.vmem %s0, %s280
        %p282 = pneg %p44
        %p283 = pneg %p41
        %p284 = pneg %p65
        %p285 = pneg %p62
        %p286 = pneg %p86
        %p287 = pneg %p83
        %p288 = pneg %p107
        %p289 = pneg %p104
        %p290 = pneg %p128
        %p291 = pneg %p125
        %p292 = pneg %p149
        %p293 = pneg %p146
        %p294 = pneg %p170
        %p295 = pneg %p167
        %p296 = pneg %p196
        %p297 = pneg %p193
        %s298 = sand.u32 %s183, 1
        %s299 = scalar_lea.sflag [#allocation7], %s298
        %s300 = sand.u32 %s183, 1
        %s301 = smul.addr %s300, 32
        %s302 = scalar_lea.vmem [#allocation10], %s301
        %s303 = smul.u32 4, %s23
        %p304 = scmp.lt.s32.totalorder %s303, 7
        %s305 = scalar_select %p304, %s303, 7
        %s306 = smul.addr %s305, 4
        %s307 = scalar_lea.vmem %s0, %s306
        %s308 = smul.u32 4, %s23
        %s309 = smul.u32 4, %s23
        %p311 = scmp.eq.s32.totalorder %s23, 0
        // Predicated region
        $region57: #{tpu_custom_call.1} parent=47 // pred_check
          %p312 = pneg %p311
        $region58: #{tpu_custom_call.1} parent=47 // pred_check_branch
          %314 = sbr.rel (%p312) target = $region60
        $region59: #{tpu_custom_call.1} parent=47 // pred_region
          %315 = vst [vmem:[#allocation4] sm:$0xff] 0.0
        $region60: #{tpu_custom_call.1} parent=47 // pred_fallthru
          _
        %v316 = vld [vmem:[%s307] sm:$0xf]
        %v317 = vld [vmem:[%s307 + $0x4] sm:$0xf]
        %v318 = vld [vmem:[%s307 + $0x8] sm:$0xf]
        %v319 = vld [vmem:[%s307 + $0xc] sm:$0xf]
        %v320 = vld [vmem:[%s1] sm:$0xff]
        %v321 = vld [vmem:[%s1 + $0x8] sm:$0xf]
        %v322 = vld [vmem:[%s3] sm:$0x7]
        %v324 = vlaneseq
        %v325 = vshrl.u32 %v324, 7
        %v326 = vsub.s32 0, %v325
        %v327 = vrot.slane %v322, %v326
        %v328 = vlaneseq
        %v329 = vshrl.u32 %v328, 7
        %v330 = vsub.s32 1, %v329
        %v331 = vrot.slane %v322, %v330
        %v332 = vlaneseq
        %v333 = vshrl.u32 %v332, 7
        %v334 = vsub.s32 2, %v333
        %v335 = vrot.slane %v322, %v334
        %v343 = vunpack.c.l.b16 %v316
        %v344 = vunpack.c.l.b16 %v317
        %v345 = vunpack.c.l.b16 %v318
        %v346 = vunpack.c.l.b16 %v319
        %v347 = vpack.c.b16 %v344, %v343
        %v348 = vpack.c.b16 %v346, %v345
        %v351 = vunpack.c.l.b16 %v320
        %v352 = vunpack.c.h.b16 %v320
        %v353 = vunpack.c.l.b16 %v321
        %v354 = vpack.c.b16 %v351, %v351
        %v355 = vpack.c.b16 %v352, %v352
        %v356 = vpack.c.b16 %v353, %v353
        %vm357 = vcmask 64512
        %v359 = vsel %vm357, %v347, 0
        %v362 = vsel %vm357, %v348, 0
        %vm364 = vcmask 1043456
        %v366 = vsel %vm364, %v354, 0
        %v369 = vsel %vm364, %v355, 0
        %v372 = vsel %vm364, %v356, 0
        %374 = vmatprep.subr.bf16.mxu0 0
        %375 = vmatpush1.bf16.msra.mxu0 0
        %376 = vmatprep.subr.bf16.mxu0 0
        %377 = vmatpush1.bf16.msra.mxu0 0
        %378 = vmatprep.subr.bf16.mxu0 0
        %379 = vmatpush1.bf16.msra.mxu0 0
        %380 = vmatprep.subr.bf16.mxu0 0
        %381 = vmatpush1.bf16.msra.mxu0 0
        %382 = vmatprep.subr.bf16.mxu0 0
        %383 = vmatpush1.bf16.msra.mxu0 0
        %384 = vmatprep.subr.bf16.mxu0 0
        %385 = vmatpush1.bf16.msra.mxu0 0
        %386 = vmatprep.subr.bf16.mxu0 0
        %387 = vmatpush1.bf16.msra.mxu0 0
        %388 = vmatprep.subr.bf16.mxu0 %v369
        %389 = vmatpush1.bf16.msra.mxu0 %v366
        %390 = vmatprep.subr.bf16.mxu0 0
        %391 = vmatpush2.bf16.msra.mxu0 0
        %392 = vmatprep.subr.bf16.mxu0 0
        %393 = vmatpush2.bf16.msra.mxu0 0
        %394 = vmatprep.subr.bf16.mxu0 0
        %395 = vmatpush2.bf16.msra.mxu0 0
        %396 = vmatprep.subr.bf16.mxu0 0
        %397 = vmatpush2.bf16.msra.mxu0 0
        %398 = vmatprep.subr.bf16.mxu0 0
        %399 = vmatpush2.bf16.msra.mxu0 0
        %400 = vmatprep.subr.bf16.mxu0 0
        %401 = vmatpush2.bf16.msra.mxu0 0
        %402 = vmatprep.subr.bf16.mxu0 0
        %403 = vmatpush2.bf16.msra.mxu0 0
        %404 = vmatprep.subr.bf16.mxu0 0
        %405 = vmatpush2.bf16.msra.mxu0 0
        %406 = vmatprep.mubr.bf16.mxu0 0
        %407 = vmatmul.mubr.bf16.gmra.mxu0 %v359
        %v408 = vpop.f32.mrf.mxu0
        %v409 = vadd.f32 %v327, %v408
        %v410 = vpop.f32.mrf.mxu0
        %v411 = vadd.f32 %v331, %v410
        %v412 = vpop.f32.mrf.mxu0
        %v413 = vadd.f32 %v327, %v412
        %v414 = vpop.f32.mrf.mxu0
        %v415 = vadd.f32 %v331, %v414
        %416 = vmatprep.mubr.bf16.mxu0 0
        %417 = vmatmul.mubr.bf16.gmra.mxu0 %v362
        %v418 = vpop.f32.mrf.mxu0
        %v419 = vadd.f32 %v327, %v418
        %v420 = vpop.f32.mrf.mxu0
        %v421 = vadd.f32 %v331, %v420
        %v422 = vpop.f32.mrf.mxu0
        %v423 = vadd.f32 %v327, %v422
        %v424 = vpop.f32.mrf.mxu0
        %v425 = vadd.f32 %v331, %v424
        %426 = vdwg.mxu0
        %427 = vmatprep.subr.bf16.mxu0 0
        %428 = vmatpush1.bf16.msra.mxu0 0
        %429 = vmatprep.subr.bf16.mxu0 0
        %430 = vmatpush1.bf16.msra.mxu0 0
        %431 = vmatprep.subr.bf16.mxu0 0
        %432 = vmatpush1.bf16.msra.mxu0 0
        %433 = vmatprep.subr.bf16.mxu0 0
        %434 = vmatpush1.bf16.msra.mxu0 0
        %435 = vmatprep.subr.bf16.mxu0 0
        %436 = vmatpush1.bf16.msra.mxu0 0
        %437 = vmatprep.subr.bf16.mxu0 0
        %438 = vmatpush1.bf16.msra.mxu0 0
        %439 = vmatprep.subr.bf16.mxu0 0
        %440 = vmatpush1.bf16.msra.mxu0 0
        %441 = vmatprep.subr.bf16.mxu0 0
        %442 = vmatpush1.bf16.msra.mxu0 %v372
        %443 = vmatprep.subr.bf16.mxu0 0
        %444 = vmatpush2.bf16.msra.mxu0 0
        %445 = vmatprep.subr.bf16.mxu0 0
        %446 = vmatpush2.bf16.msra.mxu0 0
        %447 = vmatprep.subr.bf16.mxu0 0
        %448 = vmatpush2.bf16.msra.mxu0 0
        %449 = vmatprep.subr.bf16.mxu0 0
        %450 = vmatpush2.bf16.msra.mxu0 0
        %451 = vmatprep.subr.bf16.mxu0 0
        %452 = vmatpush2.bf16.msra.mxu0 0
        %453 = vmatprep.subr.bf16.mxu0 0
        %454 = vmatpush2.bf16.msra.mxu0 0
        %455 = vmatprep.subr.bf16.mxu0 0
        %456 = vmatpush2.bf16.msra.mxu0 0
        %457 = vmatprep.subr.bf16.mxu0 0
        %458 = vmatpush2.bf16.msra.mxu0 0
        %459 = vmatprep.mubr.bf16.mxu0 0
        %460 = vmatmul.mubr.bf16.gmra.mxu0 %v359
        %v461 = vpop.f32.mrf.mxu0
        %v462 = vadd.f32 %v335, %v461
        %v463 = vpop.f32.mrf.mxu0
        %v464 = vpop.f32.mrf.mxu0
        %v465 = vadd.f32 %v335, %v464
        %v466 = vpop.f32.mrf.mxu0
        %467 = vmatprep.mubr.bf16.mxu0 0
        %468 = vmatmul.mubr.bf16.gmra.mxu0 %v362
        %v469 = vpop.f32.mrf.mxu0
        %v470 = vadd.f32 %v335, %v469
        %v471 = vpop.f32.mrf.mxu0
        %v472 = vpop.f32.mrf.mxu0
        %v473 = vadd.f32 %v335, %v472
        %v474 = vpop.f32.mrf.mxu0
        %475 = vdwg.mxu0
        %476 = vst [vmem:[#allocation2] sm:$0xff] %v409
        %477 = vst [vmem:[#allocation2 + $0x8] sm:$0xff] %v411
        %478 = vst [vmem:[#allocation2 + $0x10] sm:$0xff] %v462
        %479 = vst [vmem:[#allocation2 + $0x18] sm:$0xff] %v413
        %480 = vst [vmem:[#allocation2 + $0x20] sm:$0xff] %v415
        %481 = vst [vmem:[#allocation2 + $0x28] sm:$0xff] %v465
        %482 = vst [vmem:[#allocation2 + $0x30] sm:$0xff] %v419
        %483 = vst [vmem:[#allocation2 + $0x38] sm:$0xff] %v421
        %484 = vst [vmem:[#allocation2 + $0x40] sm:$0xff] %v470
        %485 = vst [vmem:[#allocation2 + $0x48] sm:$0xff] %v423
        %486 = vst [vmem:[#allocation2 + $0x50] sm:$0xff] %v425
        %487 = vst [vmem:[#allocation2 + $0x58] sm:$0xff] %v473
        %v488 = vld [vmem:[#allocation5] sm:$0xff]
        %v489 = vld [vmem:[#allocation5 + $0x8] sm:$0xf]
        %v490 = vld [vmem:[#allocation5 + $0xc] sm:$0xff]
        %v491 = vld [vmem:[#allocation5 + $0x14] sm:$0xf]
        %v492 = vld [vmem:[#allocation5 + $0x18] sm:$0xff]
        %v493 = vld [vmem:[#allocation5 + $0x20] sm:$0xf]
        %v494 = vld [vmem:[#allocation5 + $0x24] sm:$0xff]
        %v495 = vld [vmem:[#allocation5 + $0x2c] sm:$0xf]
        %v496 = vld [vmem:[#allocation5 + $0x30] sm:$0xff]
        %v497 = vld [vmem:[#allocation5 + $0x38] sm:$0xf]
        %v498 = vld [vmem:[#allocation5 + $0x3c] sm:$0xff]
        %v499 = vld [vmem:[#allocation5 + $0x44] sm:$0xf]
        %v500 = vld [vmem:[#allocation5 + $0x48] sm:$0xff]
        %v501 = vld [vmem:[#allocation5 + $0x50] sm:$0xf]
        %v502 = vld [vmem:[#allocation5 + $0x54] sm:$0xff]
        %v503 = vld [vmem:[#allocation5 + $0x5c] sm:$0xf]
        %v504 = vld [vmem:[#allocation5 + $0x60] sm:$0xff]
        %v505 = vld [vmem:[#allocation5 + $0x68] sm:$0xf]
        %v506 = vld [vmem:[#allocation5 + $0x6c] sm:$0xff]
        %v507 = vld [vmem:[#allocation5 + $0x74] sm:$0xf]
        %v508 = vld [vmem:[#allocation5 + $0x78] sm:$0xff]
        %v509 = vld [vmem:[#allocation5 + $0x80] sm:$0xf]
        %v510 = vld [vmem:[#allocation5 + $0x84] sm:$0xff]
        %v511 = vld [vmem:[#allocation5 + $0x8c] sm:$0xf]
        %v512 = vld [vmem:[#allocation5 + $0x90] sm:$0xff]
        %v513 = vld [vmem:[#allocation5 + $0x98] sm:$0xf]
        %v514 = vld [vmem:[#allocation5 + $0x9c] sm:$0xff]
        %v515 = vld [vmem:[#allocation5 + $0xa4] sm:$0xf]
        %v516 = vld [vmem:[#allocation5 + $0xa8] sm:$0xff]
        %v517 = vld [vmem:[#allocation5 + $0xb0] sm:$0xf]
        %v518 = vld [vmem:[#allocation5 + $0xb4] sm:$0xff]
        %v519 = vld [vmem:[#allocation5 + $0xbc] sm:$0xf]
        %v520 = vld [vmem:[%s4] sm:$0x1]
        %v522 = vlaneseq
        %v523 = vshrl.u32 %v522, 7
        %v524 = vsub.s32 0, %v523
        %v525 = vrot.slane %v520, %v524
        %v527 = vld [vmem:[#allocation4] sm:$0xff]
        %s528 = smul.u32 0, 3
        %s529 = smul.addr %s528, 8
        %s530 = scalar_lea.vmem [#allocation2], %s529
        %v531 = vld [vmem:[%s530] sm:$0xff]
        %v532 = vld [vmem:[%s530 + $0x8] sm:$0xff]
        %v533 = vld [vmem:[%s530 + $0x10] sm:$0xff]
        %v534 = vpack.c.bf16 %v527, %v527
        %v567 = vunpack.c.l.b16 %v488
        %v568 = vunpack.c.h.b16 %v488
        %v569 = vunpack.c.l.b16 %v489
        %v570 = vunpack.c.l.b16 %v490
        %v571 = vunpack.c.h.b16 %v490
        %v572 = vunpack.c.l.b16 %v491
        %v573 = vunpack.c.l.b16 %v492
        %v574 = vunpack.c.h.b16 %v492
        %v575 = vunpack.c.l.b16 %v493
        %v576 = vunpack.c.l.b16 %v494
        %v577 = vunpack.c.h.b16 %v494
        %v578 = vunpack.c.l.b16 %v495
        %v579 = vunpack.c.l.b16 %v496
        %v580 = vunpack.c.h.b16 %v496
        %v581 = vunpack.c.l.b16 %v497
        %v582 = vunpack.c.l.b16 %v498
        %v583 = vunpack.c.h.b16 %v498
        %v584 = vunpack.c.l.b16 %v499
        %v585 = vunpack.c.l.b16 %v500
        %v586 = vunpack.c.h.b16 %v500
        %v587 = vunpack.c.l.b16 %v501
        %v588 = vunpack.c.l.b16 %v502
        %v589 = vunpack.c.h.b16 %v502
        %v590 = vunpack.c.l.b16 %v503
        %v591 = vunpack.c.l.b16 %v504
        %v592 = vunpack.c.h.b16 %v504
        %v593 = vunpack.c.l.b16 %v505
        %v594 = vunpack.c.l.b16 %v506
        %v595 = vunpack.c.h.b16 %v506
        %v596 = vunpack.c.l.b16 %v507
        %v597 = vunpack.c.l.b16 %v508
        %v598 = vunpack.c.h.b16 %v508
        %v599 = vunpack.c.l.b16 %v509
        %v600 = vunpack.c.l.b16 %v510
        %v601 = vunpack.c.h.b16 %v510
        %v602 = vunpack.c.l.b16 %v511
        %v603 = vunpack.c.l.b16 %v512
        %v604 = vunpack.c.h.b16 %v512
        %v605 = vunpack.c.l.b16 %v513
        %v606 = vunpack.c.l.b16 %v514
        %v607 = vunpack.c.h.b16 %v514
        %v608 = vunpack.c.l.b16 %v515
        %v609 = vunpack.c.l.b16 %v516
        %v610 = vunpack.c.h.b16 %v516
        %v611 = vunpack.c.l.b16 %v517
        %v612 = vunpack.c.l.b16 %v518
        %v613 = vunpack.c.h.b16 %v518
        %v614 = vunpack.c.l.b16 %v519
        %v615 = vpack.c.b16 %v570, %v567
        %v616 = vpack.c.b16 %v571, %v568
        %v617 = vpack.c.b16 %v572, %v569
        %v618 = vpack.c.b16 %v576, %v573
        %v619 = vpack.c.b16 %v577, %v574
        %v620 = vpack.c.b16 %v578, %v575
        %v621 = vpack.c.b16 %v582, %v579
        %v622 = vpack.c.b16 %v583, %v580
        %v623 = vpack.c.b16 %v584, %v581
        %v624 = vpack.c.b16 %v588, %v585
        %v625 = vpack.c.b16 %v589, %v586
        %v626 = vpack.c.b16 %v590, %v587
        %v627 = vpack.c.b16 %v594, %v591
        %v628 = vpack.c.b16 %v595, %v592
        %v629 = vpack.c.b16 %v596, %v593
        %v630 = vpack.c.b16 %v600, %v597
        %v631 = vpack.c.b16 %v601, %v598
        %v632 = vpack.c.b16 %v602, %v599
        %v633 = vpack.c.b16 %v606, %v603
        %v634 = vpack.c.b16 %v607, %v604
        %v635 = vpack.c.b16 %v608, %v605
        %v636 = vpack.c.b16 %v612, %v609
        %v637 = vpack.c.b16 %v613, %v610
        %v638 = vpack.c.b16 %v614, %v611
        %663 = vmatprep.subr.bf16.mxu0 %v637
        %664 = vmatpush1.bf16.msra.mxu0 %v636
        %665 = vmatprep.subr.bf16.mxu0 %v634
        %666 = vmatpush1.bf16.msra.mxu0 %v633
        %667 = vmatprep.subr.bf16.mxu0 %v631
        %668 = vmatpush1.bf16.msra.mxu0 %v630
        %669 = vmatprep.subr.bf16.mxu0 %v628
        %670 = vmatpush1.bf16.msra.mxu0 %v627
        %671 = vmatprep.subr.bf16.mxu0 %v625
        %672 = vmatpush1.bf16.msra.mxu0 %v624
        %673 = vmatprep.subr.bf16.mxu0 %v622
        %674 = vmatpush1.bf16.msra.mxu0 %v621
        %675 = vmatprep.subr.bf16.mxu0 %v619
        %676 = vmatpush1.bf16.msra.mxu0 %v618
        %677 = vmatprep.subr.bf16.mxu0 %v616
        %678 = vmatpush1.bf16.msra.mxu0 %v615
        %679 = vmatprep.subr.bf16.mxu0 0
        %680 = vmatpush2.bf16.msra.mxu0 0
        %681 = vmatprep.subr.bf16.mxu0 0
        %682 = vmatpush2.bf16.msra.mxu0 0
        %683 = vmatprep.subr.bf16.mxu0 0
        %684 = vmatpush2.bf16.msra.mxu0 0
        %685 = vmatprep.subr.bf16.mxu0 0
        %686 = vmatpush2.bf16.msra.mxu0 0
        %687 = vmatprep.subr.bf16.mxu0 0
        %688 = vmatpush2.bf16.msra.mxu0 0
        %689 = vmatprep.subr.bf16.mxu0 0
        %690 = vmatpush2.bf16.msra.mxu0 0
        %691 = vmatprep.subr.bf16.mxu0 0
        %692 = vmatpush2.bf16.msra.mxu0 0
        %693 = vmatprep.subr.bf16.mxu0 0
        %694 = vmatpush2.bf16.msra.mxu0 0
        %695 = vmatprep.mubr.bf16.mxu0 0
        %696 = vmatmul.mubr.bf16.gmra.mxu0 %v534
        %v697 = vpop.f32.mrf.mxu0
        %v698 = vadd.f32 0.0, %v697
        %v699 = vpop.f32.mrf.mxu0
        %v700 = vadd.f32 0.0, %v699
        %v701 = vpop.f32.mrf.mxu0
        %v702 = vpop.f32.mrf.mxu0
        %703 = vdwg.mxu0
        %704 = vmatprep.subr.bf16.mxu0 0
        %705 = vmatpush1.bf16.msra.mxu0 %v638
        %706 = vmatprep.subr.bf16.mxu0 0
        %707 = vmatpush1.bf16.msra.mxu0 %v635
        %708 = vmatprep.subr.bf16.mxu0 0
        %709 = vmatpush1.bf16.msra.mxu0 %v632
        %710 = vmatprep.subr.bf16.mxu0 0
        %711 = vmatpush1.bf16.msra.mxu0 %v629
        %712 = vmatprep.subr.bf16.mxu0 0
        %713 = vmatpush1.bf16.msra.mxu0 %v626
        %714 = vmatprep.subr.bf16.mxu0 0
        %715 = vmatpush1.bf16.msra.mxu0 %v623
        %716 = vmatprep.subr.bf16.mxu0 0
        %717 = vmatpush1.bf16.msra.mxu0 %v620
        %718 = vmatprep.subr.bf16.mxu0 0
        %719 = vmatpush1.bf16.msra.mxu0 %v617
        %720 = vmatprep.subr.bf16.mxu0 0
        %721 = vmatpush2.bf16.msra.mxu0 0
        %722 = vmatprep.subr.bf16.mxu0 0
        %723 = vmatpush2.bf16.msra.mxu0 0
        %724 = vmatprep.subr.bf16.mxu0 0
        %725 = vmatpush2.bf16.msra.mxu0 0
        %726 = vmatprep.subr.bf16.mxu0 0
        %727 = vmatpush2.bf16.msra.mxu0 0
        %728 = vmatprep.subr.bf16.mxu0 0
        %729 = vmatpush2.bf16.msra.mxu0 0
        %730 = vmatprep.subr.bf16.mxu0 0
        %731 = vmatpush2.bf16.msra.mxu0 0
        %732 = vmatprep.subr.bf16.mxu0 0
        %733 = vmatpush2.bf16.msra.mxu0 0
        %734 = vmatprep.subr.bf16.mxu0 0
        %735 = vmatpush2.bf16.msra.mxu0 0
        %736 = vmatprep.mubr.bf16.mxu0 0
        %737 = vmatmul.mubr.bf16.gmra.mxu0 %v534
        %v738 = vpop.f32.mrf.mxu0
        %v739 = vadd.f32 0.0, %v738
        %v740 = vpop.f32.mrf.mxu0
        %v741 = vpop.f32.mrf.mxu0
        %v742 = vpop.f32.mrf.mxu0
        %743 = vdwg.mxu0
        %v744 = vadd.f32 %v531, %v698
        %v745 = vxor.u32 %v744, 2147483648
        %v746 = vmul.f32 %v745, 1.442695
        %v747 = vpow.pop %v746
        %v748 = vadd.f32 %v747, 1.0
        %v749 = vrcp.pop %v748
        %v750 = vmul.f32 1.0, %v749
        %v751 = vadd.f32 %v532, %v700
        %v752 = vxor.u32 %v751, 2147483648
        %v753 = vmul.f32 %v752, 1.442695
        %v754 = vpow.pop %v753
        %v755 = vadd.f32 %v754, 1.0
        %v756 = vrcp.pop %v755
        %v757 = vmul.f32 1.0, %v756
        %v758 = vadd.f32 %v739, %v525
        %v759 = vmul.f32 %v750, %v758
        %v760 = vadd.f32 %v533, %v759
        %v761 = vtanh.pop %v760
        %v762 = vsub.f32 1.0, %v757
        %v763 = vmul.f32 %v762, %v761
        %v764 = vmul.f32 %v757, %v527
        %v765 = vadd.f32 %v763, %v764
        %766 = vst [vmem:[#allocation3] sm:$0xff] %v765
        %s767 = smul.u32 1, 3
        %s768 = smul.addr %s767, 8
        %s769 = scalar_lea.vmem [#allocation2], %s768
        %v770 = vld [vmem:[%s769] sm:$0xff]
        %v771 = vld [vmem:[%s769 + $0x8] sm:$0xff]
        %v772 = vld [vmem:[%s769 + $0x10] sm:$0xff]
        %v773 = vpack.c.bf16 %v765, %v765
        %774 = vmatprep.subr.bf16.mxu0 %v637
        %775 = vmatpush1.bf16.msra.mxu0 %v636
        %776 = vmatprep.subr.bf16.mxu0 %v634
        %777 = vmatpush1.bf16.msra.mxu0 %v633
        %778 = vmatprep.subr.bf16.mxu0 %v631
        %779 = vmatpush1.bf16.msra.mxu0 %v630
        %780 = vmatprep.subr.bf16.mxu0 %v628
        %781 = vmatpush1.bf16.msra.mxu0 %v627
        %782 = vmatprep.subr.bf16.mxu0 %v625
        %783 = vmatpush1.bf16.msra.mxu0 %v624
        %784 = vmatprep.subr.bf16.mxu0 %v622
        %785 = vmatpush1.bf16.msra.mxu0 %v621
        %786 = vmatprep.subr.bf16.mxu0 %v619
        %787 = vmatpush1.bf16.msra.mxu0 %v618
        %788 = vmatprep.subr.bf16.mxu0 %v616
        %789 = vmatpush1.bf16.msra.mxu0 %v615
        %790 = vmatprep.subr.bf16.mxu0 0
        %791 = vmatpush2.bf16.msra.mxu0 0
        %792 = vmatprep.subr.bf16.mxu0 0
        %793 = vmatpush2.bf16.msra.mxu0 0
        %794 = vmatprep.subr.bf16.mxu0 0
        %795 = vmatpush2.bf16.msra.mxu0 0
        %796 = vmatprep.subr.bf16.mxu0 0
        %797 = vmatpush2.bf16.msra.mxu0 0
        %798 = vmatprep.subr.bf16.mxu0 0
        %799 = vmatpush2.bf16.msra.mxu0 0
        %800 = vmatprep.subr.bf16.mxu0 0
        %801 = vmatpush2.bf16.msra.mxu0 0
        %802 = vmatprep.subr.bf16.mxu0 0
        %803 = vmatpush2.bf16.msra.mxu0 0
        %804 = vmatprep.subr.bf16.mxu0 0
        %805 = vmatpush2.bf16.msra.mxu0 0
        %806 = vmatprep.mubr.bf16.mxu0 0
        %807 = vmatmul.mubr.bf16.gmra.mxu0 %v773
        %v808 = vpop.f32.mrf.mxu0
        %v809 = vadd.f32 0.0, %v808
        %v810 = vpop.f32.mrf.mxu0
        %v811 = vadd.f32 0.0, %v810
        %v812 = vpop.f32.mrf.mxu0
        %v813 = vpop.f32.mrf.mxu0
        %814 = vdwg.mxu0
        %815 = vmatprep.subr.bf16.mxu0 0
        %816 = vmatpush1.bf16.msra.mxu0 %v638
        %817 = vmatprep.subr.bf16.mxu0 0
        %818 = vmatpush1.bf16.msra.mxu0 %v635
        %819 = vmatprep.subr.bf16.mxu0 0
        %820 = vmatpush1.bf16.msra.mxu0 %v632
        %821 = vmatprep.subr.bf16.mxu0 0
        %822 = vmatpush1.bf16.msra.mxu0 %v629
        %823 = vmatprep.subr.bf16.mxu0 0
        %824 = vmatpush1.bf16.msra.mxu0 %v626
        %825 = vmatprep.subr.bf16.mxu0 0
        %826 = vmatpush1.bf16.msra.mxu0 %v623
        %827 = vmatprep.subr.bf16.mxu0 0
        %828 = vmatpush1.bf16.msra.mxu0 %v620
        %829 = vmatprep.subr.bf16.mxu0 0
        %830 = vmatpush1.bf16.msra.mxu0 %v617
        %831 = vmatprep.subr.bf16.mxu0 0
        %832 = vmatpush2.bf16.msra.mxu0 0
        %833 = vmatprep.subr.bf16.mxu0 0
        %834 = vmatpush2.bf16.msra.mxu0 0
        %835 = vmatprep.subr.bf16.mxu0 0
        %836 = vmatpush2.bf16.msra.mxu0 0
        %837 = vmatprep.subr.bf16.mxu0 0
        %838 = vmatpush2.bf16.msra.mxu0 0
        %839 = vmatprep.subr.bf16.mxu0 0
        %840 = vmatpush2.bf16.msra.mxu0 0
        %841 = vmatprep.subr.bf16.mxu0 0
        %842 = vmatpush2.bf16.msra.mxu0 0
        %843 = vmatprep.subr.bf16.mxu0 0
        %844 = vmatpush2.bf16.msra.mxu0 0
        %845 = vmatprep.subr.bf16.mxu0 0
        %846 = vmatpush2.bf16.msra.mxu0 0
        %847 = vmatprep.mubr.bf16.mxu0 0
        %848 = vmatmul.mubr.bf16.gmra.mxu0 %v773
        %v849 = vpop.f32.mrf.mxu0
        %v850 = vadd.f32 0.0, %v849
        %v851 = vpop.f32.mrf.mxu0
        %v852 = vpop.f32.mrf.mxu0
        %v853 = vpop.f32.mrf.mxu0
        %854 = vdwg.mxu0
        %v855 = vadd.f32 %v770, %v809
        %v856 = vxor.u32 %v855, 2147483648
        %v857 = vmul.f32 %v856, 1.442695
        %v858 = vpow.pop %v857
        %v859 = vadd.f32 %v858, 1.0
        %v860 = vrcp.pop %v859
        %v861 = vmul.f32 1.0, %v860
        %v862 = vadd.f32 %v771, %v811
        %v863 = vxor.u32 %v862, 2147483648
        %v864 = vmul.f32 %v863, 1.442695
        %v865 = vpow.pop %v864
        %v866 = vadd.f32 %v865, 1.0
        %v867 = vrcp.pop %v866
        %v868 = vmul.f32 1.0, %v867
        %v869 = vadd.f32 %v850, %v525
        %v870 = vmul.f32 %v861, %v869
        %v871 = vadd.f32 %v772, %v870
        %v872 = vtanh.pop %v871
        %v873 = vsub.f32 1.0, %v868
        %v874 = vmul.f32 %v873, %v872
        %v875 = vmul.f32 %v868, %v765
        %v876 = vadd.f32 %v874, %v875
        %s877 = scalar_lea.vmem [#allocation3], 8
        %878 = vst [vmem:[%s877] sm:$0xff] %v876
        %s879 = smul.u32 2, 3
        %s880 = smul.addr %s879, 8
        %s881 = scalar_lea.vmem [#allocation2], %s880
        %v882 = vld [vmem:[%s881] sm:$0xff]
        %v883 = vld [vmem:[%s881 + $0x8] sm:$0xff]
        %v884 = vld [vmem:[%s881 + $0x10] sm:$0xff]
        %v885 = vpack.c.bf16 %v876, %v876
        %886 = vmatprep.subr.bf16.mxu0 %v637
        %887 = vmatpush1.bf16.msra.mxu0 %v636
        %888 = vmatprep.subr.bf16.mxu0 %v634
        %889 = vmatpush1.bf16.msra.mxu0 %v633
        %890 = vmatprep.subr.bf16.mxu0 %v631
        %891 = vmatpush1.bf16.msra.mxu0 %v630
        %892 = vmatprep.subr.bf16.mxu0 %v628
        %893 = vmatpush1.bf16.msra.mxu0 %v627
        %894 = vmatprep.subr.bf16.mxu0 %v625
        %895 = vmatpush1.bf16.msra.mxu0 %v624
        %896 = vmatprep.subr.bf16.mxu0 %v622
        %897 = vmatpush1.bf16.msra.mxu0 %v621
        %898 = vmatprep.subr.bf16.mxu0 %v619
        %899 = vmatpush1.bf16.msra.mxu0 %v618
        %900 = vmatprep.subr.bf16.mxu0 %v616
        %901 = vmatpush1.bf16.msra.mxu0 %v615
        %902 = vmatprep.subr.bf16.mxu0 0
        %903 = vmatpush2.bf16.msra.mxu0 0
        %904 = vmatprep.subr.bf16.mxu0 0
        %905 = vmatpush2.bf16.msra.mxu0 0
        %906 = vmatprep.subr.bf16.mxu0 0
        %907 = vmatpush2.bf16.msra.mxu0 0
        %908 = vmatprep.subr.bf16.mxu0 0
        %909 = vmatpush2.bf16.msra.mxu0 0
        %910 = vmatprep.subr.bf16.mxu0 0
        %911 = vmatpush2.bf16.msra.mxu0 0
        %912 = vmatprep.subr.bf16.mxu0 0
        %913 = vmatpush2.bf16.msra.mxu0 0
        %914 = vmatprep.subr.bf16.mxu0 0
        %915 = vmatpush2.bf16.msra.mxu0 0
        %916 = vmatprep.subr.bf16.mxu0 0
        %917 = vmatpush2.bf16.msra.mxu0 0
        %918 = vmatprep.mubr.bf16.mxu0 0
        %919 = vmatmul.mubr.bf16.gmra.mxu0 %v885
        %v920 = vpop.f32.mrf.mxu0
        %v921 = vadd.f32 0.0, %v920
        %v922 = vpop.f32.mrf.mxu0
        %v923 = vadd.f32 0.0, %v922
        %v924 = vpop.f32.mrf.mxu0
        %v925 = vpop.f32.mrf.mxu0
        %926 = vdwg.mxu0
        %927 = vmatprep.subr.bf16.mxu0 0
        %928 = vmatpush1.bf16.msra.mxu0 %v638
        %929 = vmatprep.subr.bf16.mxu0 0
        %930 = vmatpush1.bf16.msra.mxu0 %v635
        %931 = vmatprep.subr.bf16.mxu0 0
        %932 = vmatpush1.bf16.msra.mxu0 %v632
        %933 = vmatprep.subr.bf16.mxu0 0
        %934 = vmatpush1.bf16.msra.mxu0 %v629
        %935 = vmatprep.subr.bf16.mxu0 0
        %936 = vmatpush1.bf16.msra.mxu0 %v626
        %937 = vmatprep.subr.bf16.mxu0 0
        %938 = vmatpush1.bf16.msra.mxu0 %v623
        %939 = vmatprep.subr.bf16.mxu0 0
        %940 = vmatpush1.bf16.msra.mxu0 %v620
        %941 = vmatprep.subr.bf16.mxu0 0
        %942 = vmatpush1.bf16.msra.mxu0 %v617
        %943 = vmatprep.subr.bf16.mxu0 0
        %944 = vmatpush2.bf16.msra.mxu0 0
        %945 = vmatprep.subr.bf16.mxu0 0
        %946 = vmatpush2.bf16.msra.mxu0 0
        %947 = vmatprep.subr.bf16.mxu0 0
        %948 = vmatpush2.bf16.msra.mxu0 0
        %949 = vmatprep.subr.bf16.mxu0 0
        %950 = vmatpush2.bf16.msra.mxu0 0
        %951 = vmatprep.subr.bf16.mxu0 0
        %952 = vmatpush2.bf16.msra.mxu0 0
        %953 = vmatprep.subr.bf16.mxu0 0
        %954 = vmatpush2.bf16.msra.mxu0 0
        %955 = vmatprep.subr.bf16.mxu0 0
        %956 = vmatpush2.bf16.msra.mxu0 0
        %957 = vmatprep.subr.bf16.mxu0 0
        %958 = vmatpush2.bf16.msra.mxu0 0
        %959 = vmatprep.mubr.bf16.mxu0 0
        %960 = vmatmul.mubr.bf16.gmra.mxu0 %v885
        %v961 = vpop.f32.mrf.mxu0
        %v962 = vadd.f32 0.0, %v961
        %v963 = vpop.f32.mrf.mxu0
        %v964 = vpop.f32.mrf.mxu0
        %v965 = vpop.f32.mrf.mxu0
        %966 = vdwg.mxu0
        %v967 = vadd.f32 %v882, %v921
        %v968 = vxor.u32 %v967, 2147483648
        %v969 = vmul.f32 %v968, 1.442695
        %v970 = vpow.pop %v969
        %v971 = vadd.f32 %v970, 1.0
        %v972 = vrcp.pop %v971
        %v973 = vmul.f32 1.0, %v972
        %v974 = vadd.f32 %v883, %v923
        %v975 = vxor.u32 %v974, 2147483648
        %v976 = vmul.f32 %v975, 1.442695
        %v977 = vpow.pop %v976
        %v978 = vadd.f32 %v977, 1.0
        %v979 = vrcp.pop %v978
        %v980 = vmul.f32 1.0, %v979
        %v981 = vadd.f32 %v962, %v525
        %v982 = vmul.f32 %v973, %v981
        %v983 = vadd.f32 %v884, %v982
        %v984 = vtanh.pop %v983
        %v985 = vsub.f32 1.0, %v980
        %v986 = vmul.f32 %v985, %v984
        %v987 = vmul.f32 %v980, %v876
        %v988 = vadd.f32 %v986, %v987
        %s989 = scalar_lea.vmem [#allocation3], 16
        %990 = vst [vmem:[%s989] sm:$0xff] %v988
        %s991 = smul.u32 3, 3
        %s992 = smul.addr %s991, 8
        %s993 = scalar_lea.vmem [#allocation2], %s992
        %v994 = vld [vmem:[%s993] sm:$0xff]
        %v995 = vld [vmem:[%s993 + $0x8] sm:$0xff]
        %v996 = vld [vmem:[%s993 + $0x10] sm:$0xff]
        %v997 = vpack.c.bf16 %v988, %v988
        %998 = vmatprep.subr.bf16.mxu0 %v637
        %999 = vmatpush1.bf16.msra.mxu0 %v636
        %1000 = vmatprep.subr.bf16.mxu0 %v634
        %1001 = vmatpush1.bf16.msra.mxu0 %v633
        %1002 = vmatprep.subr.bf16.mxu0 %v631
        %1003 = vmatpush1.bf16.msra.mxu0 %v630
        %1004 = vmatprep.subr.bf16.mxu0 %v628
        %1005 = vmatpush1.bf16.msra.mxu0 %v627
        %1006 = vmatprep.subr.bf16.mxu0 %v625
        %1007 = vmatpush1.bf16.msra.mxu0 %v624
        %1008 = vmatprep.subr.bf16.mxu0 %v622
        %1009 = vmatpush1.bf16.msra.mxu0 %v621
        %1010 = vmatprep.subr.bf16.mxu0 %v619
        %1011 = vmatpush1.bf16.msra.mxu0 %v618
        %1012 = vmatprep.subr.bf16.mxu0 %v616
        %1013 = vmatpush1.bf16.msra.mxu0 %v615
        %1014 = vmatprep.subr.bf16.mxu0 0
        %1015 = vmatpush2.bf16.msra.mxu0 0
        %1016 = vmatprep.subr.bf16.mxu0 0
        %1017 = vmatpush2.bf16.msra.mxu0 0
        %1018 = vmatprep.subr.bf16.mxu0 0
        %1019 = vmatpush2.bf16.msra.mxu0 0
        %1020 = vmatprep.subr.bf16.mxu0 0
        %1021 = vmatpush2.bf16.msra.mxu0 0
        %1022 = vmatprep.subr.bf16.mxu0 0
        %1023 = vmatpush2.bf16.msra.mxu0 0
        %1024 = vmatprep.subr.bf16.mxu0 0
        %1025 = vmatpush2.bf16.msra.mxu0 0
        %1026 = vmatprep.subr.bf16.mxu0 0
        %1027 = vmatpush2.bf16.msra.mxu0 0
        %1028 = vmatprep.subr.bf16.mxu0 0
        %1029 = vmatpush2.bf16.msra.mxu0 0
        %1030 = vmatprep.mubr.bf16.mxu0 0
        %1031 = vmatmul.mubr.bf16.gmra.mxu0 %v997
        %v1032 = vpop.f32.mrf.mxu0
        %v1033 = vadd.f32 0.0, %v1032
        %v1034 = vpop.f32.mrf.mxu0
        %v1035 = vadd.f32 0.0, %v1034
        %v1036 = vpop.f32.mrf.mxu0
        %v1037 = vpop.f32.mrf.mxu0
        %1038 = vdwg.mxu0
        %1039 = vmatprep.subr.bf16.mxu0 0
        %1040 = vmatpush1.bf16.msra.mxu0 %v638
        %1041 = vmatprep.subr.bf16.mxu0 0
        %1042 = vmatpush1.bf16.msra.mxu0 %v635
        %1043 = vmatprep.subr.bf16.mxu0 0
        %1044 = vmatpush1.bf16.msra.mxu0 %v632
        %1045 = vmatprep.subr.bf16.mxu0 0
        %1046 = vmatpush1.bf16.msra.mxu0 %v629
        %1047 = vmatprep.subr.bf16.mxu0 0
        %1048 = vmatpush1.bf16.msra.mxu0 %v626
        %1049 = vmatprep.subr.bf16.mxu0 0
        %1050 = vmatpush1.bf16.msra.mxu0 %v623
        %1051 = vmatprep.subr.bf16.mxu0 0
        %1052 = vmatpush1.bf16.msra.mxu0 %v620
        %1053 = vmatprep.subr.bf16.mxu0 0
        %1054 = vmatpush1.bf16.msra.mxu0 %v617
        %1055 = vmatprep.subr.bf16.mxu0 0
        %1056 = vmatpush2.bf16.msra.mxu0 0
        %1057 = vmatprep.subr.bf16.mxu0 0
        %1058 = vmatpush2.bf16.msra.mxu0 0
        %1059 = vmatprep.subr.bf16.mxu0 0
        %1060 = vmatpush2.bf16.msra.mxu0 0
        %1061 = vmatprep.subr.bf16.mxu0 0
        %1062 = vmatpush2.bf16.msra.mxu0 0
        %1063 = vmatprep.subr.bf16.mxu0 0
        %1064 = vmatpush2.bf16.msra.mxu0 0
        %1065 = vmatprep.subr.bf16.mxu0 0
        %1066 = vmatpush2.bf16.msra.mxu0 0
        %1067 = vmatprep.subr.bf16.mxu0 0
        %1068 = vmatpush2.bf16.msra.mxu0 0
        %1069 = vmatprep.subr.bf16.mxu0 0
        %1070 = vmatpush2.bf16.msra.mxu0 0
        %1071 = vmatprep.mubr.bf16.mxu0 0
        %1072 = vmatmul.mubr.bf16.gmra.mxu0 %v997
        %v1073 = vpop.f32.mrf.mxu0
        %v1074 = vadd.f32 0.0, %v1073
        %v1075 = vpop.f32.mrf.mxu0
        %v1076 = vpop.f32.mrf.mxu0
        %v1077 = vpop.f32.mrf.mxu0
        %1078 = vdwg.mxu0
        %v1079 = vadd.f32 %v994, %v1033
        %v1080 = vxor.u32 %v1079, 2147483648
        %v1081 = vmul.f32 %v1080, 1.442695
        %v1082 = vpow.pop %v1081
        %v1083 = vadd.f32 %v1082, 1.0
        %v1084 = vrcp.pop %v1083
        %v1085 = vmul.f32 1.0, %v1084
        %v1086 = vadd.f32 %v995, %v1035
        %v1087 = vxor.u32 %v1086, 2147483648
        %v1088 = vmul.f32 %v1087, 1.442695
        %v1089 = vpow.pop %v1088
        %v1090 = vadd.f32 %v1089, 1.0
        %v1091 = vrcp.pop %v1090
        %v1092 = vmul.f32 1.0, %v1091
        %v1093 = vadd.f32 %v1074, %v525
        %v1094 = vmul.f32 %v1085, %v1093
        %v1095 = vadd.f32 %v996, %v1094
        %v1096 = vtanh.pop %v1095
        %v1097 = vsub.f32 1.0, %v1092
        %v1098 = vmul.f32 %v1097, %v1096
        %v1099 = vmul.f32 %v1092, %v988
        %v1100 = vadd.f32 %v1098, %v1099
        %s1101 = scalar_lea.vmem [#allocation3], 24
        %1102 = vst [vmem:[%s1101] sm:$0xff] %v1100
        %1103 = vst [vmem:[#allocation4] sm:$0xff] %v1100
        %v1104 = vld [vmem:[#allocation3] sm:$0xff]
        %v1105 = vld [vmem:[#allocation3 + $0x8] sm:$0xff]
        %v1106 = vld [vmem:[#allocation3 + $0x10] sm:$0xff]
        %v1107 = vld [vmem:[#allocation3 + $0x18] sm:$0xff]
        %v1108 = vpack.c.bf16 %v1105, %v1104
        %v1109 = vpack.c.bf16 %v1107, %v1106
        %v1110 = vld [vmem:[#allocation8] sm:$0xf]
        %v1111 = vld [vmem:[#allocation8 + $0x4] sm:$0xf]
        %v1112 = vld [vmem:[#allocation8 + $0x8] sm:$0xf]
        %v1113 = vld [vmem:[#allocation8 + $0xc] sm:$0xf]
        %v1114 = vld [vmem:[#allocation8 + $0x10] sm:$0xf]
        %v1115 = vld [vmem:[#allocation8 + $0x14] sm:$0xf]
        %v1116 = vld [vmem:[#allocation8 + $0x18] sm:$0xf]
        %v1117 = vld [vmem:[#allocation8 + $0x1c] sm:$0xf]
        %v1118 = vld [vmem:[#allocation8 + $0x20] sm:$0xf]
        %v1119 = vld [vmem:[#allocation8 + $0x24] sm:$0xf]
        %v1120 = vld [vmem:[#allocation8 + $0x28] sm:$0xf]
        %v1121 = vld [vmem:[#allocation8 + $0x2c] sm:$0xf]
        %v1122 = vld [vmem:[#allocation8 + $0x30] sm:$0xf]
        %v1123 = vld [vmem:[#allocation8 + $0x34] sm:$0xf]
        %v1124 = vld [vmem:[#allocation8 + $0x38] sm:$0xf]
        %v1125 = vld [vmem:[#allocation8 + $0x3c] sm:$0xf]
        %v1126 = vld [vmem:[%s6] sm:$0x1]
        %v1128 = vlaneseq
        %v1129 = vshrl.u32 %v1128, 7
        %v1130 = vsub.s32 0, %v1129
        %v1131 = vrot.slane %v1126, %v1130
        %v1149 = vunpack.c.l.b16 %v1110
        %v1150 = vunpack.c.l.b16 %v1111
        %v1151 = vunpack.c.l.b16 %v1112
        %v1152 = vunpack.c.l.b16 %v1113
        %v1153 = vunpack.c.l.b16 %v1114
        %v1154 = vunpack.c.l.b16 %v1115
        %v1155 = vunpack.c.l.b16 %v1116
        %v1156 = vunpack.c.l.b16 %v1117
        %v1157 = vunpack.c.l.b16 %v1118
        %v1158 = vunpack.c.l.b16 %v1119
        %v1159 = vunpack.c.l.b16 %v1120
        %v1160 = vunpack.c.l.b16 %v1121
        %v1161 = vunpack.c.l.b16 %v1122
        %v1162 = vunpack.c.l.b16 %v1123
        %v1163 = vunpack.c.l.b16 %v1124
        %v1164 = vunpack.c.l.b16 %v1125
        %v1165 = vpack.c.b16 %v1150, %v1149
        %v1166 = vpack.c.b16 %v1152, %v1151
        %v1167 = vpack.c.b16 %v1154, %v1153
        %v1168 = vpack.c.b16 %v1156, %v1155
        %v1169 = vpack.c.b16 %v1158, %v1157
        %v1170 = vpack.c.b16 %v1160, %v1159
        %v1171 = vpack.c.b16 %v1162, %v1161
        %v1172 = vpack.c.b16 %v1164, %v1163
        %1181 = vmatprep.subr.bf16.mxu0 0
        %1182 = vmatpush1.bf16.msra.mxu0 %v1172
        %1183 = vmatprep.subr.bf16.mxu0 0
        %1184 = vmatpush1.bf16.msra.mxu0 %v1171
        %1185 = vmatprep.subr.bf16.mxu0 0
        %1186 = vmatpush1.bf16.msra.mxu0 %v1170
        %1187 = vmatprep.subr.bf16.mxu0 0
        %1188 = vmatpush1.bf16.msra.mxu0 %v1169
        %1189 = vmatprep.subr.bf16.mxu0 0
        %1190 = vmatpush1.bf16.msra.mxu0 %v1168
        %1191 = vmatprep.subr.bf16.mxu0 0
        %1192 = vmatpush1.bf16.msra.mxu0 %v1167
        %1193 = vmatprep.subr.bf16.mxu0 0
        %1194 = vmatpush1.bf16.msra.mxu0 %v1166
        %1195 = vmatprep.subr.bf16.mxu0 0
        %1196 = vmatpush1.bf16.msra.mxu0 %v1165
        %1197 = vmatprep.subr.bf16.mxu0 0
        %1198 = vmatpush2.bf16.msra.mxu0 0
        %1199 = vmatprep.subr.bf16.mxu0 0
        %1200 = vmatpush2.bf16.msra.mxu0 0
        %1201 = vmatprep.subr.bf16.mxu0 0
        %1202 = vmatpush2.bf16.msra.mxu0 0
        %1203 = vmatprep.subr.bf16.mxu0 0
        %1204 = vmatpush2.bf16.msra.mxu0 0
        %1205 = vmatprep.subr.bf16.mxu0 0
        %1206 = vmatpush2.bf16.msra.mxu0 0
        %1207 = vmatprep.subr.bf16.mxu0 0
        %1208 = vmatpush2.bf16.msra.mxu0 0
        %1209 = vmatprep.subr.bf16.mxu0 0
        %1210 = vmatpush2.bf16.msra.mxu0 0
        %1211 = vmatprep.subr.bf16.mxu0 0
        %1212 = vmatpush2.bf16.msra.mxu0 0
        %1213 = vmatprep.mubr.bf16.mxu0 0
        %1214 = vmatmul.mubr.bf16.gmra.mxu0 %v1108
        %v1215 = vpop.f32.mrf.mxu0
        %v1216 = vadd.f32 %v1131, %v1215
        %v1217 = vpop.f32.mrf.mxu0
        %v1218 = vpop.f32.mrf.mxu0
        %v1219 = vadd.f32 %v1131, %v1218
        %v1220 = vpop.f32.mrf.mxu0
        %1221 = vmatprep.mubr.bf16.mxu0 0
        %1222 = vmatmul.mubr.bf16.gmra.mxu0 %v1109
        %v1223 = vpop.f32.mrf.mxu0
        %v1224 = vadd.f32 %v1131, %v1223
        %v1225 = vpop.f32.mrf.mxu0
        %v1226 = vpop.f32.mrf.mxu0
        %v1227 = vadd.f32 %v1131, %v1226
        %v1228 = vpop.f32.mrf.mxu0
        %1229 = vdwg.mxu0
        %1230 = vst [vmem:[%s302] sm:$0xff] %v1216
        %1231 = vst [vmem:[%s302 + $0x8] sm:$0xff] %v1219
        %1232 = vst [vmem:[%s302 + $0x10] sm:$0xff] %v1224
        %1233 = vst [vmem:[%s302 + $0x18] sm:$0xff] %v1227
        %s1234 = sand.u32 %s183, 1
        %s1235 = scalar_lea.sflag [#allocation7], %s1234
        %s1236 = sand.u32 %s183, 1
        %s1237 = smul.addr %s1236, 32
        %s1238 = scalar_lea.vmem [#allocation10], %s1237
        // Predicated region
        $region61: #{tpu_custom_call.1} parent=47 // pred_check
          %p1239 = pneg %p193
        $region62: #{tpu_custom_call.1} parent=47 // pred_check_branch
          %1241 = sbr.rel (%p1239) target = $region64
        $region63: #{tpu_custom_call.1} parent=47 // pred_region
          %s1242 = smul.u32 4, %s23
          %s1244 = ssub.s32 512, 512
          %1245 = vsyncadd %s1235, %s1244
          %s1246 = smul.addr %s1242, 128
          %s1247 = scalar_lea.hbm %s7, %s1246
          %s1248 = sshll.u32 %s1238, 4
          %s1249 = int_to_ptr.vmem [resolvable:$true] %s1248
          %1254 = dma.vmem_to_hbm [thread:$0]  %s1249, 512, %s1247, %s1235, 128, 128, 8
        $region64: #{tpu_custom_call.1} parent=47 // pred_fallthru
          _
      $region48: #{tpu_custom_call.1} parent=5 // pred_fallthru
        _
      %p1255 = scmp.le.s32.totalorder 2, %s18
      // Predicated region
      $region65: #{tpu_custom_call.1} parent=5 // pred_check
        %p1256 = pneg %p1255
      $region66: #{tpu_custom_call.1} parent=5 // pred_check_branch
        %1258 = sbr.rel (%p1256) target = $region68
      $region67: #{tpu_custom_call.1} parent=5 // pred_region
        %s1259 = ssub.s32 %s18, 2
        // Predicated region
        $region69: #{tpu_custom_call.1} parent=67 // pred_check
          %p1260 = pneg %p199
        $region70: #{tpu_custom_call.1} parent=67 // pred_check_branch
          %1262 = sbr.rel (%p1260) target = $region72
        $region71: #{tpu_custom_call.1} parent=67 // pred_region
          %s1263 = sand.u32 %s184, 1
          %s1264 = scalar_lea.sflag [#allocation7], %s1263
          %s1265 = sand.u32 %s184, 1
          %s1266 = smul.addr %s1265, 32
          %s1267 = scalar_lea.vmem [#allocation10], %s1266
          %1268 = dma.done %s1264, 512
        $region72: #{tpu_custom_call.1} parent=67 // pred_fallthru
          _
      $region68: #{tpu_custom_call.1} parent=5 // pred_fallthru
        _
    $region6: #{tpu_custom_call.1} parent=1 // loop_footer
      %s22 = sadd.s32 1, %s18
    $region7: #{tpu_custom_call.1} parent=1 // loop_footer_branch
      %17 = sbr.rel target = $region3
    $region8: #{tpu_custom_call.1} parent=1 // loop_exit
      _
    %1269 = vsyncpa [#allocation6], 1
    %s1270 = scalar_lea.sflag [#allocation6], 1
    %1271 = vsyncpa %s1270, 1
    %1272 = vsyncpa [#allocation9], 1
    %1273 = vsyncpa [#allocation7], 1
    %s1274 = scalar_lea.sflag [#allocation7], 1
    %1275 = vsyncpa %s1274, 1

</llo_original>
